<compile_context>
chip_gen: v7x
topology: tpu7x:2x2x1
jax: 0.10.0
libtpu: 0.0.40
codegen_flags: <defaults>
</compile_context>

<pallas_src>
import math
import functools

import jax
import jax.numpy as jnp
from jax import lax
from jax.experimental import pallas as pl
from jax.experimental.pallas import tpu as pltpu

TB = 256  # tokens (output rows) per grid step


def _embed_kernel(ids_ref, table_ref, out_ref, *, vocab, scale):
    """One grid step: gather TB embedding rows via a one-hot MXU matmul, scale, store."""
    ids = ids_ref[...]                                   # (1, TB) int32, tokens on lanes
    tb = ids.shape[1]

    # onehot[v, t] = (v == ids[t]); broadcasting (1, TB) along sublanes is cheap (VPU).
    vocab_iota = lax.broadcasted_iota(jnp.int32, (vocab, tb), 0)
    onehot = (vocab_iota == ids).astype(jnp.float32)     # (vocab, TB)

    # Contract over vocab (dim 0 of both operands) -> (TB, d_model) on the MXU.
    # HIGHEST precision keeps the f32 "gather" exact: exactly one 1.0 per column,
    # everything else contributes exact zeros.
    gathered = lax.dot_general(
        onehot,
        table_ref[...],
        dimension_numbers=(((0,), (0,)), ((), ())),
        precision=lax.Precision.HIGHEST,
        preferred_element_type=jnp.float32,
    )

    # Single scale multiply + single dense tile store.
    # (If d_model < 128 the store is lane-masked; the big sublane dim (TB rows)
    #  is the mitigation chosen here — see review note on lane-dense outputs.)
    out_ref[...] = (gathered * jnp.float32(scale)).astype(out_ref.dtype)


def embeddings_forward(x, table, *, tb=TB):
    """x: (batch, seq) int32 token ids; table: (vocab, d_model) f32.
    Returns (batch, seq, d_model) f32 == table[x] * sqrt(d_model)."""
    batch, seq = x.shape
    vocab, d_model = table.shape
    n = batch * seq

    n_steps = pl.cdiv(n, tb)
    n_pad = n_steps * tb

    ids = x.reshape(n).astype(jnp.int32)
    if n_pad != n:
        # Pad with id 0; padded rows are computed (harmless) and sliced off below.
        ids = jnp.pad(ids, (0, n_pad - n))
    ids = ids.reshape(1, n_pad)  # lane-major: each grid step reads a dense (1, TB) slab

    # VMEM plan: resident table (double-buffered by Pallas, though its block index
    # never changes) + double-buffered (TB, d_model) output tiles + (1, TB) id tiles.
    # Only raise the scoped limit when this outgrows the tightest default (16 MiB, v5e).
    bytes_needed = 2 * (vocab * d_model + tb * d_model + tb) * 4 + (2 << 20)
    vmem_limit = None if bytes_needed <= (16 << 20) else min(bytes_needed, 100 << 20)

    kernel = functools.partial(_embed_kernel, vocab=vocab, scale=math.sqrt(d_model))

    out_flat = pl.pallas_call(
        kernel,
        out_shape=jax.ShapeDtypeStruct((n_pad, d_model), table.dtype),
        grid=(n_steps,),
        in_specs=[
            # token-id tile for this step (lane axis walks the flattened tokens)
            pl.BlockSpec((1, tb), lambda i: (0, i)),
            # whole (small) embedding table resident in VMEM every step
            pl.BlockSpec((vocab, d_model), lambda i: (0, 0)),
        ],
        out_specs=pl.BlockSpec((tb, d_model), lambda i: (i, 0)),
        compiler_params=pltpu.CompilerParams(
            dimension_semantics=("parallel",),   # independent tiles -> megacore-shardable
            vmem_limit_bytes=vmem_limit,
        ),
    )(ids, table)

    return out_flat[:n].reshape(batch, seq, d_model)


if __name__ == "__main__":
    d_model = 32
    vocab = 100
    batch, seq = 2, 8

    key = jax.random.PRNGKey(0)
    k_table, k_ids = jax.random.split(key)

    # nn.Embedding default init: N(0, 1)
    table = jax.random.normal(k_table, (vocab, d_model), dtype=jnp.float32)
    x = jax.random.randint(k_ids, (batch, seq), 0, vocab, dtype=jnp.int32)

    out = embeddings_forward(x, table)
    out = jax.block_until_ready(out)

    # reference (plain JAX) check
    ref = table[x] * jnp.float32(math.sqrt(d_model))
    assert out.shape == (batch, seq, d_model)
    assert jnp.allclose(out, ref, atol=1e-6, rtol=1e-6)

    print("KERNEL_OK")
</pallas_src>

<mosaic_0001>
module attributes {stable_mosaic.version = 11 : i64} {
  func.func @_embed_kernel(%arg0: i32, %arg1: memref<1x256xi32, #tpu.memory_space<vmem>>, %arg2: memref<100x32xf32, #tpu.memory_space<vmem>>, %arg3: memref<256x32xf32, #tpu.memory_space<vmem>>) attributes {dimension_semantics = [#tpu.dimension_semantics<parallel>], iteration_bounds = array<i64: 1>, scalar_prefetch = 0 : i64, scratch_operands = 0 : i64, tpu.core_type = #tpu.core_type<tc>, window_params = [{transform_indices = @transform_0, window_bounds = array<i64: 1, 256>}, {pipeline_mode = #tpu.pipeline_mode<synchronous>, transform_indices = @transform_1, window_bounds = array<i64: 100, 32>}, {transform_indices = @transform_2, window_bounds = array<i64: 256, 32>}]} {
    %c0 = arith.constant 0 : index
    %c0_0 = arith.constant 0 : index
    %0 = vector.load %arg1[%c0, %c0_0] : memref<1x256xi32, #tpu.memory_space<vmem>>, vector<1x256xi32>
    %1 = tpu.iota {dimensions = array<i32: 0>} : vector<100x256xi32>
    %2 = vector.broadcast %0 : vector<1x256xi32> to vector<100x256xi32>
    %3 = arith.cmpi eq, %1, %2 : vector<100x256xi32>
    %4 = arith.extui %3 : vector<100x256xi1> to vector<100x256xi32>
    %5 = arith.sitofp %4 : vector<100x256xi32> to vector<100x256xf32>
    %c0_1 = arith.constant 0 : index
    %c0_2 = arith.constant 0 : index
    %6 = vector.load %arg2[%c0_1, %c0_2] : memref<100x32xf32, #tpu.memory_space<vmem>>, vector<100x32xf32>
    %cst = arith.constant dense<0.000000e+00> : vector<256x32xf32>
    %7 = tpu.matmul %5, %6, %cst {dimension_numbers = #tpu.dot_dimension_numbers<[0], [0], [1], [1], [0, 1, 1, 1], [], []>, precision = #tpu.contract_precision<fp32>} : vector<100x256xf32>, vector<100x32xf32>, vector<256x32xf32> -> vector<256x32xf32>
    %cst_3 = arith.constant 5.65685415 : f32
    %8 = vector.broadcast %cst_3 : f32 to vector<256x32xf32>
    %9 = arith.mulf %7, %8 : vector<256x32xf32>
    %c0_4 = arith.constant 0 : index
    %c0_5 = arith.constant 0 : index
    %10 = vector.load %arg3[%c0_4, %c0_5] : memref<256x32xf32, #tpu.memory_space<vmem>>, vector<256x32xf32>
    tpu.vector_store %arg3[%c0_4, %c0_5], %9 {strides = array<i32>} : memref<256x32xf32, #tpu.memory_space<vmem>>, vector<256x32xf32>,
    return
  }
  func.func @transform_0(%arg0: i32) -> (i32, i32) {
    %c0_i32 = arith.constant 0 : i32
    %c0_i32_0 = arith.constant 0 : i32
    return %c0_i32, %arg0 : i32, i32
  }
  func.func @transform_1(%arg0: i32) -> (i32, i32) {
    %c0_i32 = arith.constant 0 : i32
    %c0_i32_0 = arith.constant 0 : i32
    %c0_i32_1 = arith.constant 0 : i32
    return %c0_i32, %c0_i32_0 : i32, i32
  }
  func.func @transform_2(%arg0: i32) -> (i32, i32) {
    %c0_i32 = arith.constant 0 : i32
    %c0_i32_0 = arith.constant 0 : i32
    return %arg0, %c0_i32 : i32, i32
  }
}

</mosaic_0001>

<llo_original>
// kernel: tpu_custom_call.1
$region0: #{tpu_custom_call.1}
  #allocation0 [shape = 'u32[]', space=smem, size = 0x4, offset = 0x4, fixed_abs, tag = 'smem constant byte address 0x4 - core index']
  #allocation1 [shape = 'u32[144,128]{1,0:T(1,128)}', space=vmem, size = 0x12000, scoped, tag = 'internal scratch']
  %s0 = inlined_call_operand.vmem [shape: s32[1,256], index: 0, kind: input, shape index: {}]
  %s1 = inlined_call_operand.vmem [shape: f32[100,32], index: 1, kind: input, shape index: {}]
  %s2 = inlined_call_operand.vmem [shape: f32[256,32], index: 2, kind: output, shape index: {}]
  %s3 = sld [smem:[#allocation0]]
  $region18: #{tpu_custom_call.1} parent=0
    _
  %s5 = ssub.s32 1, %s3
  %s6 = scalar_select 0, %s5, %s3
  // Predicated region
  $region2: #{tpu_custom_call.1} parent=0 // pred_check
    _
  $region3: #{tpu_custom_call.1} parent=0 // pred_check_branch
    %8 = sbr.rel (0) target = $region5
  $region4: #{tpu_custom_call.1} parent=0 // pred_region
    _
  $region5: #{tpu_custom_call.1} parent=0 // pred_fallthru
    _
  // Predicated region
  $region6: #{tpu_custom_call.1} parent=0 // pred_check
    _
  $region7: #{tpu_custom_call.1} parent=0 // pred_check_branch
    %10 = sbr.rel (0) target = $region9
  $region8: #{tpu_custom_call.1} parent=0 // pred_region
    _
  $region9: #{tpu_custom_call.1} parent=0 // pred_fallthru
    _
  %v11 = vld [vmem:[%s0] sm:$0x3]
  %v12 = vlaneseq
  %v13 = vshrl.u32 %v12, 7
  %v14 = vadd.s32 %v13, 8
  %v15 = vadd.s32 %v13, 16
  %v16 = vadd.s32 %v13, 24
  %v17 = vadd.s32 %v13, 32
  %v18 = vadd.s32 %v13, 40
  %v19 = vadd.s32 %v13, 48
  %v20 = vadd.s32 %v13, 56
  %v21 = vadd.s32 %v13, 64
  %v22 = vadd.s32 %v13, 72
  %v23 = vadd.s32 %v13, 80
  %v24 = vadd.s32 %v13, 88
  %v25 = vadd.s32 %v13, 96
  %v26 = vlaneseq
  %v27 = vshrl.u32 %v26, 7
  %v28 = vsub.s32 0, %v27
  %v29 = vrot.slane %v11, %v28
  %v30 = vlaneseq
  %v31 = vshrl.u32 %v30, 7
  %v32 = vsub.s32 1, %v31
  %v33 = vrot.slane %v11, %v32
  %vm34 = vcmp.eq.s32.totalorder %v13, %v29
  %vm35 = vcmp.eq.s32.totalorder %v13, %v33
  %vm36 = vcmp.eq.s32.totalorder %v14, %v29
  %vm37 = vcmp.eq.s32.totalorder %v14, %v33
  %vm38 = vcmp.eq.s32.totalorder %v15, %v29
  %vm39 = vcmp.eq.s32.totalorder %v15, %v33
  %vm40 = vcmp.eq.s32.totalorder %v16, %v29
  %vm41 = vcmp.eq.s32.totalorder %v16, %v33
  %vm42 = vcmp.eq.s32.totalorder %v17, %v29
  %vm43 = vcmp.eq.s32.totalorder %v17, %v33
  %vm44 = vcmp.eq.s32.totalorder %v18, %v29
  %vm45 = vcmp.eq.s32.totalorder %v18, %v33
  %vm46 = vcmp.eq.s32.totalorder %v19, %v29
  %vm47 = vcmp.eq.s32.totalorder %v19, %v33
  %vm48 = vcmp.eq.s32.totalorder %v20, %v29
  %vm49 = vcmp.eq.s32.totalorder %v20, %v33
  %vm50 = vcmp.eq.s32.totalorder %v21, %v29
  %vm51 = vcmp.eq.s32.totalorder %v21, %v33
  %vm52 = vcmp.eq.s32.totalorder %v22, %v29
  %vm53 = vcmp.eq.s32.totalorder %v22, %v33
  %vm54 = vcmp.eq.s32.totalorder %v23, %v29
  %vm55 = vcmp.eq.s32.totalorder %v23, %v33
  %vm56 = vcmp.eq.s32.totalorder %v24, %v29
  %vm57 = vcmp.eq.s32.totalorder %v24, %v33
  %vm58 = vcmp.eq.s32.totalorder %v25, %v29
  %vm59 = vcmp.eq.s32.totalorder %v25, %v33
  %v60 = vsel %vm34, 1, 0
  %v61 = vsel %vm35, 1, 0
  %v62 = vsel %vm36, 1, 0
  %v63 = vsel %vm37, 1, 0
  %v64 = vsel %vm38, 1, 0
  %v65 = vsel %vm39, 1, 0
  %v66 = vsel %vm40, 1, 0
  %v67 = vsel %vm41, 1, 0
  %v68 = vsel %vm42, 1, 0
  %v69 = vsel %vm43, 1, 0
  %v70 = vsel %vm44, 1, 0
  %v71 = vsel %vm45, 1, 0
  %v72 = vsel %vm46, 1, 0
  %v73 = vsel %vm47, 1, 0
  %v74 = vsel %vm48, 1, 0
  %v75 = vsel %vm49, 1, 0
  %v76 = vsel %vm50, 1, 0
  %v77 = vsel %vm51, 1, 0
  %v78 = vsel %vm52, 1, 0
  %v79 = vsel %vm53, 1, 0
  %v80 = vsel %vm54, 1, 0
  %v81 = vsel %vm55, 1, 0
  %v82 = vsel %vm56, 1, 0
  %v83 = vsel %vm57, 1, 0
  %v84 = vsel %vm58, 1, 0
  %v85 = vsel %vm59, 1, 0
  %v86 = vcvt.s32.f32 %v60
  %v87 = vcvt.s32.f32 %v61
  %v88 = vcvt.s32.f32 %v62
  %v89 = vcvt.s32.f32 %v63
  %v90 = vcvt.s32.f32 %v64
  %v91 = vcvt.s32.f32 %v65
  %v92 = vcvt.s32.f32 %v66
  %v93 = vcvt.s32.f32 %v67
  %v94 = vcvt.s32.f32 %v68
  %v95 = vcvt.s32.f32 %v69
  %v96 = vcvt.s32.f32 %v70
  %v97 = vcvt.s32.f32 %v71
  %v98 = vcvt.s32.f32 %v72
  %v99 = vcvt.s32.f32 %v73
  %v100 = vcvt.s32.f32 %v74
  %v101 = vcvt.s32.f32 %v75
  %v102 = vcvt.s32.f32 %v76
  %v103 = vcvt.s32.f32 %v77
  %v104 = vcvt.s32.f32 %v78
  %v105 = vcvt.s32.f32 %v79
  %v106 = vcvt.s32.f32 %v80
  %v107 = vcvt.s32.f32 %v81
  %v108 = vcvt.s32.f32 %v82
  %v109 = vcvt.s32.f32 %v83
  %v110 = vcvt.s32.f32 %v84
  %v111 = vcvt.s32.f32 %v85
  %v112 = vld [vmem:[%s1] sm:$0xff]
  %v113 = vld [vmem:[%s1 + $0x8] sm:$0xff]
  %v114 = vld [vmem:[%s1 + $0x10] sm:$0xff]
  %v115 = vld [vmem:[%s1 + $0x18] sm:$0xff]
  %v116 = vld [vmem:[%s1 + $0x20] sm:$0xff]
  %v117 = vld [vmem:[%s1 + $0x28] sm:$0xff]
  %v118 = vld [vmem:[%s1 + $0x30] sm:$0xff]
  %v119 = vld [vmem:[%s1 + $0x38] sm:$0xff]
  %v120 = vld [vmem:[%s1 + $0x40] sm:$0xff]
  %v121 = vld [vmem:[%s1 + $0x48] sm:$0xff]
  %v122 = vld [vmem:[%s1 + $0x50] sm:$0xff]
  %v123 = vld [vmem:[%s1 + $0x58] sm:$0xff]
  %v124 = vld [vmem:[%s1 + $0x60] sm:$0xf]
  %125 = vxpose.xlu0.b32.start [1/16] %v86, 128
  %126 = vxpose.xlu0.b32.cont [2/16] %v88, 128
  %127 = vxpose.xlu0.b32.cont [3/16] %v90, 128
  %128 = vxpose.xlu0.b32.cont [4/16] %v92, 128
  %129 = vxpose.xlu0.b32.cont [5/16] %v94, 128
  %130 = vxpose.xlu0.b32.cont [6/16] %v96, 128
  %131 = vxpose.xlu0.b32.cont [7/16] %v98, 128
  %132 = vxpose.xlu0.b32.cont [8/16] %v100, 128
  %133 = vxpose.xlu0.b32.cont [9/16] %v102, 128
  %134 = vxpose.xlu0.b32.cont [10/16] %v104, 128
  %135 = vxpose.xlu0.b32.cont [11/16] %v106, 128
  %136 = vxpose.xlu0.b32.cont [12/16] %v108, 128
  %137 = vxpose.xlu0.b32.cont [13/16] %v110, 128
  %138 = vxpose.xlu0.b32.cont [14/16] 0.0, 128
  %139 = vxpose.xlu0.b32.cont [15/16] 0.0, 128
  %140 = vxpose.xlu0.b32.end [16/16] 0.0, 128
  %v141 = vpop.trf.xlu0
  %v142 = vpop.trf.xlu0
  %v143 = vpop.trf.xlu0
  %v144 = vpop.trf.xlu0
  %v145 = vpop.trf.xlu0
  %v146 = vpop.trf.xlu0
  %v147 = vpop.trf.xlu0
  %v148 = vpop.trf.xlu0
  %v149 = vpop.trf.xlu0
  %v150 = vpop.trf.xlu0
  %v151 = vpop.trf.xlu0
  %v152 = vpop.trf.xlu0
  %v153 = vpop.trf.xlu0
  %v154 = vpop.trf.xlu0
  %v155 = vpop.trf.xlu0
  %v156 = vpop.trf.xlu0
  %157 = vxpose.xlu0.b32.start [1/16] %v87, 128
  %158 = vxpose.xlu0.b32.cont [2/16] %v89, 128
  %159 = vxpose.xlu0.b32.cont [3/16] %v91, 128
  %160 = vxpose.xlu0.b32.cont [4/16] %v93, 128
  %161 = vxpose.xlu0.b32.cont [5/16] %v95, 128
  %162 = vxpose.xlu0.b32.cont [6/16] %v97, 128
  %163 = vxpose.xlu0.b32.cont [7/16] %v99, 128
  %164 = vxpose.xlu0.b32.cont [8/16] %v101, 128
  %165 = vxpose.xlu0.b32.cont [9/16] %v103, 128
  %166 = vxpose.xlu0.b32.cont [10/16] %v105, 128
  %167 = vxpose.xlu0.b32.cont [11/16] %v107, 128
  %168 = vxpose.xlu0.b32.cont [12/16] %v109, 128
  %169 = vxpose.xlu0.b32.cont [13/16] %v111, 128
  %170 = vxpose.xlu0.b32.cont [14/16] 0.0, 128
  %171 = vxpose.xlu0.b32.cont [15/16] 0.0, 128
  %172 = vxpose.xlu0.b32.end [16/16] 0.0, 128
  %v173 = vpop.trf.xlu0
  %v174 = vpop.trf.xlu0
  %v175 = vpop.trf.xlu0
  %v176 = vpop.trf.xlu0
  %v177 = vpop.trf.xlu0
  %v178 = vpop.trf.xlu0
  %v179 = vpop.trf.xlu0
  %v180 = vpop.trf.xlu0
  %v181 = vpop.trf.xlu0
  %v182 = vpop.trf.xlu0
  %v183 = vpop.trf.xlu0
  %v184 = vpop.trf.xlu0
  %v185 = vpop.trf.xlu0
  %v186 = vpop.trf.xlu0
  %v187 = vpop.trf.xlu0
  %v188 = vpop.trf.xlu0
  %vm189 = vcmask 818176
  %v191 = vsel %vm189, %v141, 0
  %v194 = vsel %vm189, %v142, 0
  %v197 = vsel %vm189, %v143, 0
  %v200 = vsel %vm189, %v144, 0
  %v203 = vsel %vm189, %v145, 0
  %v206 = vsel %vm189, %v146, 0
  %v209 = vsel %vm189, %v147, 0
  %v212 = vsel %vm189, %v148, 0
  %v215 = vsel %vm189, %v149, 0
  %v218 = vsel %vm189, %v150, 0
  %v221 = vsel %vm189, %v151, 0
  %v224 = vsel %vm189, %v152, 0
  %v227 = vsel %vm189, %v153, 0
  %v230 = vsel %vm189, %v154, 0
  %v233 = vsel %vm189, %v155, 0
  %v236 = vsel %vm189, %v156, 0
  %v239 = vsel %vm189, %v173, 0
  %v242 = vsel %vm189, %v174, 0
  %v245 = vsel %vm189, %v175, 0
  %v248 = vsel %vm189, %v176, 0
  %v251 = vsel %vm189, %v177, 0
  %v254 = vsel %vm189, %v178, 0
  %v257 = vsel %vm189, %v179, 0
  %v260 = vsel %vm189, %v180, 0
  %v263 = vsel %vm189, %v181, 0
  %v266 = vsel %vm189, %v182, 0
  %v269 = vsel %vm189, %v183, 0
  %v272 = vsel %vm189, %v184, 0
  %v275 = vsel %vm189, %v185, 0
  %v278 = vsel %vm189, %v186, 0
  %v281 = vsel %vm189, %v187, 0
  %v284 = vsel %vm189, %v188, 0
  %vm286 = vcmask 1043456
  %v288 = vsel %vm286, %v124, 0
  %290 = vmatprep.subr.mxu0 0.0
  %v291 = vand.u32 %v112, 4294901760
  %292 = vmatpush1.msra.mxu0 %v291
  %293 = vmatprep.subr.mxu0 0.0
  %v294 = vand.u32 %v113, 4294901760
  %295 = vmatpush1.msra.mxu0 %v294
  %296 = vmatprep.subr.mxu0 0.0
  %v297 = vand.u32 %v114, 4294901760
  %298 = vmatpush1.msra.mxu0 %v297
  %299 = vmatprep.subr.mxu0 0.0
  %v300 = vand.u32 %v115, 4294901760
  %301 = vmatpush1.msra.mxu0 %v300
  %302 = vmatprep.subr.mxu0 0.0
  %v303 = vand.u32 %v116, 4294901760
  %304 = vmatpush1.msra.mxu0 %v303
  %305 = vmatprep.subr.mxu0 0.0
  %v306 = vand.u32 %v117, 4294901760
  %307 = vmatpush1.msra.mxu0 %v306
  %308 = vmatprep.subr.mxu0 0.0
  %v309 = vand.u32 %v118, 4294901760
  %310 = vmatpush1.msra.mxu0 %v309
  %311 = vmatprep.subr.mxu0 0.0
  %v312 = vand.u32 %v119, 4294901760
  %313 = vmatpush1.msra.mxu0 %v312
  %314 = vmatprep.subr.mxu0 0.0
  %v315 = vand.u32 %v120, 4294901760
  %316 = vmatpush1.msra.mxu0 %v315
  %317 = vmatprep.subr.mxu0 0.0
  %v318 = vand.u32 %v121, 4294901760
  %319 = vmatpush1.msra.mxu0 %v318
  %320 = vmatprep.subr.mxu0 0.0
  %v321 = vand.u32 %v122, 4294901760
  %322 = vmatpush1.msra.mxu0 %v321
  %323 = vmatprep.subr.mxu0 0.0
  %v324 = vand.u32 %v123, 4294901760
  %325 = vmatpush1.msra.mxu0 %v324
  %326 = vmatprep.subr.mxu0 0.0
  %v327 = vand.u32 %v288, 4294901760
  %328 = vmatpush1.msra.mxu0 %v327
  %329 = vmatprep.subr.mxu0 0.0
  %330 = vmatpush1.msra.mxu0 0.0
  %331 = vmatprep.subr.mxu0 0.0
  %332 = vmatpush1.msra.mxu0 0.0
  %333 = vmatprep.subr.mxu0 0.0
  %334 = vmatpush1.msra.mxu0 0.0
  %335 = vmatprep.subr.mxu0 0.0
  %336 = vmatpush1.msra.mxu0 0.0
  %337 = vmatprep.subr.mxu0 0.0
  %338 = vmatpush1.msra.mxu0 0.0
  %339 = vmatprep.subr.mxu0 0.0
  %340 = vmatpush1.msra.mxu0 0.0
  %341 = vmatprep.subr.mxu0 0.0
  %342 = vmatpush1.msra.mxu0 0.0
  %343 = vmatprep.subr.mxu0 0.0
  %344 = vmatpush1.msra.mxu0 0.0
  %345 = vmatprep.subr.mxu0 0.0
  %346 = vmatpush1.msra.mxu0 0.0
  %347 = vmatprep.subr.mxu0 0.0
  %348 = vmatpush1.msra.mxu0 0.0
  %349 = vmatprep.subr.mxu0 0.0
  %350 = vmatpush1.msra.mxu0 0.0
  %351 = vmatprep.subr.mxu0 0.0
  %352 = vmatpush1.msra.mxu0 0.0
  %353 = vmatprep.subr.mxu0 0.0
  %354 = vmatpush1.msra.mxu0 0.0
  %355 = vmatprep.subr.mxu0 0.0
  %356 = vmatpush1.msra.mxu0 0.0
  %357 = vmatprep.subr.mxu0 0.0
  %358 = vmatpush1.msra.mxu0 0.0
  %359 = vmatprep.subr.mxu0 0.0
  %360 = vmatpush1.msra.mxu0 0.0
  %361 = vmatprep.subr.mxu0 0.0
  %362 = vmatpush1.msra.mxu0 0.0
  %363 = vmatprep.subr.mxu0 0.0
  %364 = vmatpush1.msra.mxu0 0.0
  %365 = vmatprep.subr.mxu0 0.0
  %366 = vmatpush1.msra.mxu0 0.0
  %367 = vmatprep.mubr.f32.mxu0 0.0
  %v368 = vand.u32 %v191, 4294901760
  %v369 = vsub.f32 %v191, %v368
  %v370 = vand.u32 %v369, 4294901760
  %v371 = vsub.f32 %v369, %v370
  %v372 = vand.u32 %v371, 4294901760
  %373 = vmatmul.mubr.f32.gmra.mrb[0].mxu0 %v372
  %v374 = vpop.f32.mrb[0].mxu0
  %v375 = vadd.f32 0.0, %v374
  %v376 = vpop.f32.mrb[0].mxu0
  %377 = vmatprep.mubr.f32.mxu0 0.0
  %v378 = vand.u32 %v194, 4294901760
  %v379 = vsub.f32 %v194, %v378
  %v380 = vand.u32 %v379, 4294901760
  %v381 = vsub.f32 %v379, %v380
  %v382 = vand.u32 %v381, 4294901760
  %383 = vmatmul.mubr.f32.gmra.mrb[0].mxu0 %v382
  %v384 = vpop.f32.mrb[0].mxu0
  %v385 = vadd.f32 0.0, %v384
  %v386 = vpop.f32.mrb[0].mxu0
  %387 = vmatprep.mubr.f32.mxu0 0.0
  %v388 = vand.u32 %v197, 4294901760
  %v389 = vsub.f32 %v197, %v388
  %v390 = vand.u32 %v389, 4294901760
  %v391 = vsub.f32 %v389, %v390
  %v392 = vand.u32 %v391, 4294901760
  %393 = vmatmul.mubr.f32.gmra.mrb[0].mxu0 %v392
  %v394 = vpop.f32.mrb[0].mxu0
  %v395 = vadd.f32 0.0, %v394
  %v396 = vpop.f32.mrb[0].mxu0
  %397 = vmatprep.mubr.f32.mxu0 0.0
  %v398 = vand.u32 %v200, 4294901760
  %v399 = vsub.f32 %v200, %v398
  %v400 = vand.u32 %v399, 4294901760
  %v401 = vsub.f32 %v399, %v400
  %v402 = vand.u32 %v401, 4294901760
  %403 = vmatmul.mubr.f32.gmra.mrb[0].mxu0 %v402
  %v404 = vpop.f32.mrb[0].mxu0
  %v405 = vadd.f32 0.0, %v404
  %v406 = vpop.f32.mrb[0].mxu0
  %407 = vmatprep.mubr.f32.mxu0 0.0
  %v408 = vand.u32 %v203, 4294901760
  %v409 = vsub.f32 %v203, %v408
  %v410 = vand.u32 %v409, 4294901760
  %v411 = vsub.f32 %v409, %v410
  %v412 = vand.u32 %v411, 4294901760
  %413 = vmatmul.mubr.f32.gmra.mrb[0].mxu0 %v412
  %v414 = vpop.f32.mrb[0].mxu0
  %v415 = vadd.f32 0.0, %v414
  %v416 = vpop.f32.mrb[0].mxu0
  %417 = vmatprep.mubr.f32.mxu0 0.0
  %v418 = vand.u32 %v206, 4294901760
  %v419 = vsub.f32 %v206, %v418
  %v420 = vand.u32 %v419, 4294901760
  %v421 = vsub.f32 %v419, %v420
  %v422 = vand.u32 %v421, 4294901760
  %423 = vmatmul.mubr.f32.gmra.mrb[0].mxu0 %v422
  %v424 = vpop.f32.mrb[0].mxu0
  %v425 = vadd.f32 0.0, %v424
  %v426 = vpop.f32.mrb[0].mxu0
  %427 = vmatprep.mubr.f32.mxu0 0.0
  %v428 = vand.u32 %v209, 4294901760
  %v429 = vsub.f32 %v209, %v428
  %v430 = vand.u32 %v429, 4294901760
  %v431 = vsub.f32 %v429, %v430
  %v432 = vand.u32 %v431, 4294901760
  %433 = vmatmul.mubr.f32.gmra.mrb[0].mxu0 %v432
  %v434 = vpop.f32.mrb[0].mxu0
  %v435 = vadd.f32 0.0, %v434
  %v436 = vpop.f32.mrb[0].mxu0
  %437 = vmatprep.mubr.f32.mxu0 0.0
  %v438 = vand.u32 %v212, 4294901760
  %v439 = vsub.f32 %v212, %v438
  %v440 = vand.u32 %v439, 4294901760
  %v441 = vsub.f32 %v439, %v440
  %v442 = vand.u32 %v441, 4294901760
  %443 = vmatmul.mubr.f32.gmra.mrb[0].mxu0 %v442
  %v444 = vpop.f32.mrb[0].mxu0
  %v445 = vadd.f32 0.0, %v444
  %v446 = vpop.f32.mrb[0].mxu0
  %447 = vmatprep.mubr.f32.mxu0 0.0
  %v448 = vand.u32 %v215, 4294901760
  %v449 = vsub.f32 %v215, %v448
  %v450 = vand.u32 %v449, 4294901760
  %v451 = vsub.f32 %v449, %v450
  %v452 = vand.u32 %v451, 4294901760
  %453 = vmatmul.mubr.f32.gmra.mrb[0].mxu0 %v452
  %v454 = vpop.f32.mrb[0].mxu0
  %v455 = vadd.f32 0.0, %v454
  %v456 = vpop.f32.mrb[0].mxu0
  %457 = vmatprep.mubr.f32.mxu0 0.0
  %v458 = vand.u32 %v218, 4294901760
  %v459 = vsub.f32 %v218, %v458
  %v460 = vand.u32 %v459, 4294901760
  %v461 = vsub.f32 %v459, %v460
  %v462 = vand.u32 %v461, 4294901760
  %463 = vmatmul.mubr.f32.gmra.mrb[0].mxu0 %v462
  %v464 = vpop.f32.mrb[0].mxu0
  %v465 = vadd.f32 0.0, %v464
  %v466 = vpop.f32.mrb[0].mxu0
  %467 = vmatprep.mubr.f32.mxu0 0.0
  %v468 = vand.u32 %v221, 4294901760
  %v469 = vsub.f32 %v221, %v468
  %v470 = vand.u32 %v469, 4294901760
  %v471 = vsub.f32 %v469, %v470
  %v472 = vand.u32 %v471, 4294901760
  %473 = vmatmul.mubr.f32.gmra.mrb[0].mxu0 %v472
  %v474 = vpop.f32.mrb[0].mxu0
  %v475 = vadd.f32 0.0, %v474
  %v476 = vpop.f32.mrb[0].mxu0
  %477 = vmatprep.mubr.f32.mxu0 0.0
  %v478 = vand.u32 %v224, 4294901760
  %v479 = vsub.f32 %v224, %v478
  %v480 = vand.u32 %v479, 4294901760
  %v481 = vsub.f32 %v479, %v480
  %v482 = vand.u32 %v481, 4294901760
  %483 = vmatmul.mubr.f32.gmra.mrb[0].mxu0 %v482
  %v484 = vpop.f32.mrb[0].mxu0
  %v485 = vadd.f32 0.0, %v484
  %v486 = vpop.f32.mrb[0].mxu0
  %487 = vmatprep.mubr.f32.mxu0 0.0
  %v488 = vand.u32 %v227, 4294901760
  %v489 = vsub.f32 %v227, %v488
  %v490 = vand.u32 %v489, 4294901760
  %v491 = vsub.f32 %v489, %v490
  %v492 = vand.u32 %v491, 4294901760
  %493 = vmatmul.mubr.f32.gmra.mrb[0].mxu0 %v492
  %v494 = vpop.f32.mrb[0].mxu0
  %v495 = vadd.f32 0.0, %v494
  %v496 = vpop.f32.mrb[0].mxu0
  %497 = vmatprep.mubr.f32.mxu0 0.0
  %v498 = vand.u32 %v230, 4294901760
  %v499 = vsub.f32 %v230, %v498
  %v500 = vand.u32 %v499, 4294901760
  %v501 = vsub.f32 %v499, %v500
  %v502 = vand.u32 %v501, 4294901760
  %503 = vmatmul.mubr.f32.gmra.mrb[0].mxu0 %v502
  %v504 = vpop.f32.mrb[0].mxu0
  %v505 = vadd.f32 0.0, %v504
  %v506 = vpop.f32.mrb[0].mxu0
  %507 = vmatprep.mubr.f32.mxu0 0.0
  %v508 = vand.u32 %v233, 4294901760
  %v509 = vsub.f32 %v233, %v508
  %v510 = vand.u32 %v509, 4294901760
  %v511 = vsub.f32 %v509, %v510
  %v512 = vand.u32 %v511, 4294901760
  %513 = vmatmul.mubr.f32.gmra.mrb[0].mxu0 %v512
  %v514 = vpop.f32.mrb[0].mxu0
  %v515 = vadd.f32 0.0, %v514
  %v516 = vpop.f32.mrb[0].mxu0
  %517 = vmatprep.mubr.f32.mxu0 0.0
  %v518 = vand.u32 %v236, 4294901760
  %v519 = vsub.f32 %v236, %v518
  %v520 = vand.u32 %v519, 4294901760
  %v521 = vsub.f32 %v519, %v520
  %v522 = vand.u32 %v521, 4294901760
  %523 = vmatmul.mubr.f32.gmra.mrb[0].mxu0 %v522
  %v524 = vpop.f32.mrb[0].mxu0
  %v525 = vadd.f32 0.0, %v524
  %v526 = vpop.f32.mrb[0].mxu0
  %527 = vmatprep.mubr.f32.mxu0 0.0
  %v528 = vand.u32 %v239, 4294901760
  %v529 = vsub.f32 %v239, %v528
  %v530 = vand.u32 %v529, 4294901760
  %v531 = vsub.f32 %v529, %v530
  %v532 = vand.u32 %v531, 4294901760
  %533 = vmatmul.mubr.f32.gmra.mrb[0].mxu0 %v532
  %v534 = vpop.f32.mrb[0].mxu0
  %v535 = vadd.f32 0.0, %v534
  %v536 = vpop.f32.mrb[0].mxu0
  %537 = vmatprep.mubr.f32.mxu0 0.0
  %v538 = vand.u32 %v242, 4294901760
  %v539 = vsub.f32 %v242, %v538
  %v540 = vand.u32 %v539, 4294901760
  %v541 = vsub.f32 %v539, %v540
  %v542 = vand.u32 %v541, 4294901760
  %543 = vmatmul.mubr.f32.gmra.mrb[0].mxu0 %v542
  %v544 = vpop.f32.mrb[0].mxu0
  %v545 = vadd.f32 0.0, %v544
  %v546 = vpop.f32.mrb[0].mxu0
  %547 = vmatprep.mubr.f32.mxu0 0.0
  %v548 = vand.u32 %v245, 4294901760
  %v549 = vsub.f32 %v245, %v548
  %v550 = vand.u32 %v549, 4294901760
  %v551 = vsub.f32 %v549, %v550
  %v552 = vand.u32 %v551, 4294901760
  %553 = vmatmul.mubr.f32.gmra.mrb[0].mxu0 %v552
  %v554 = vpop.f32.mrb[0].mxu0
  %v555 = vadd.f32 0.0, %v554
  %v556 = vpop.f32.mrb[0].mxu0
  %557 = vmatprep.mubr.f32.mxu0 0.0
  %v558 = vand.u32 %v248, 4294901760
  %v559 = vsub.f32 %v248, %v558
  %v560 = vand.u32 %v559, 4294901760
  %v561 = vsub.f32 %v559, %v560
  %v562 = vand.u32 %v561, 4294901760
  %563 = vmatmul.mubr.f32.gmra.mrb[0].mxu0 %v562
  %v564 = vpop.f32.mrb[0].mxu0
  %v565 = vadd.f32 0.0, %v564
  %v566 = vpop.f32.mrb[0].mxu0
  %567 = vmatprep.mubr.f32.mxu0 0.0
  %v568 = vand.u32 %v251, 4294901760
  %v569 = vsub.f32 %v251, %v568
  %v570 = vand.u32 %v569, 4294901760
  %v571 = vsub.f32 %v569, %v570
  %v572 = vand.u32 %v571, 4294901760
  %573 = vmatmul.mubr.f32.gmra.mrb[0].mxu0 %v572
  %v574 = vpop.f32.mrb[0].mxu0
  %v575 = vadd.f32 0.0, %v574
  %v576 = vpop.f32.mrb[0].mxu0
  %577 = vmatprep.mubr.f32.mxu0 0.0
  %v578 = vand.u32 %v254, 4294901760
  %v579 = vsub.f32 %v254, %v578
  %v580 = vand.u32 %v579, 4294901760
  %v581 = vsub.f32 %v579, %v580
  %v582 = vand.u32 %v581, 4294901760
  %583 = vmatmul.mubr.f32.gmra.mrb[0].mxu0 %v582
  %v584 = vpop.f32.mrb[0].mxu0
  %v585 = vadd.f32 0.0, %v584
  %v586 = vpop.f32.mrb[0].mxu0
  %587 = vmatprep.mubr.f32.mxu0 0.0
  %v588 = vand.u32 %v257, 4294901760
  %v589 = vsub.f32 %v257, %v588
  %v590 = vand.u32 %v589, 4294901760
  %v591 = vsub.f32 %v589, %v590
  %v592 = vand.u32 %v591, 4294901760
  %593 = vmatmul.mubr.f32.gmra.mrb[0].mxu0 %v592
  %v594 = vpop.f32.mrb[0].mxu0
  %v595 = vadd.f32 0.0, %v594
  %v596 = vpop.f32.mrb[0].mxu0
  %597 = vmatprep.mubr.f32.mxu0 0.0
  %v598 = vand.u32 %v260, 4294901760
  %v599 = vsub.f32 %v260, %v598
  %v600 = vand.u32 %v599, 4294901760
  %v601 = vsub.f32 %v599, %v600
  %v602 = vand.u32 %v601, 4294901760
  %603 = vmatmul.mubr.f32.gmra.mrb[0].mxu0 %v602
  %v604 = vpop.f32.mrb[0].mxu0
  %v605 = vadd.f32 0.0, %v604
  %v606 = vpop.f32.mrb[0].mxu0
  %607 = vmatprep.mubr.f32.mxu0 0.0
  %v608 = vand.u32 %v263, 4294901760
  %v609 = vsub.f32 %v263, %v608
  %v610 = vand.u32 %v609, 4294901760
  %v611 = vsub.f32 %v609, %v610
  %v612 = vand.u32 %v611, 4294901760
  %613 = vmatmul.mubr.f32.gmra.mrb[0].mxu0 %v612
  %v614 = vpop.f32.mrb[0].mxu0
  %v615 = vadd.f32 0.0, %v614
  %v616 = vpop.f32.mrb[0].mxu0
  %617 = vmatprep.mubr.f32.mxu0 0.0
  %v618 = vand.u32 %v266, 4294901760
  %v619 = vsub.f32 %v266, %v618
  %v620 = vand.u32 %v619, 4294901760
  %v621 = vsub.f32 %v619, %v620
  %v622 = vand.u32 %v621, 4294901760
  %623 = vmatmul.mubr.f32.gmra.mrb[0].mxu0 %v622
  %v624 = vpop.f32.mrb[0].mxu0
  %v625 = vadd.f32 0.0, %v624
  %v626 = vpop.f32.mrb[0].mxu0
  %627 = vmatprep.mubr.f32.mxu0 0.0
  %v628 = vand.u32 %v269, 4294901760
  %v629 = vsub.f32 %v269, %v628
  %v630 = vand.u32 %v629, 4294901760
  %v631 = vsub.f32 %v629, %v630
  %v632 = vand.u32 %v631, 4294901760
  %633 = vmatmul.mubr.f32.gmra.mrb[0].mxu0 %v632
  %v634 = vpop.f32.mrb[0].mxu0
  %v635 = vadd.f32 0.0, %v634
  %v636 = vpop.f32.mrb[0].mxu0
  %637 = vmatprep.mubr.f32.mxu0 0.0
  %v638 = vand.u32 %v272, 4294901760
  %v639 = vsub.f32 %v272, %v638
  %v640 = vand.u32 %v639, 4294901760
  %v641 = vsub.f32 %v639, %v640
  %v642 = vand.u32 %v641, 4294901760
  %643 = vmatmul.mubr.f32.gmra.mrb[0].mxu0 %v642
  %v644 = vpop.f32.mrb[0].mxu0
  %v645 = vadd.f32 0.0, %v644
  %v646 = vpop.f32.mrb[0].mxu0
  %647 = vmatprep.mubr.f32.mxu0 0.0
  %v648 = vand.u32 %v275, 4294901760
  %v649 = vsub.f32 %v275, %v648
  %v650 = vand.u32 %v649, 4294901760
  %v651 = vsub.f32 %v649, %v650
  %v652 = vand.u32 %v651, 4294901760
  %653 = vmatmul.mubr.f32.gmra.mrb[0].mxu0 %v652
  %v654 = vpop.f32.mrb[0].mxu0
  %v655 = vadd.f32 0.0, %v654
  %v656 = vpop.f32.mrb[0].mxu0
  %657 = vmatprep.mubr.f32.mxu0 0.0
  %v658 = vand.u32 %v278, 4294901760
  %v659 = vsub.f32 %v278, %v658
  %v660 = vand.u32 %v659, 4294901760
  %v661 = vsub.f32 %v659, %v660
  %v662 = vand.u32 %v661, 4294901760
  %663 = vmatmul.mubr.f32.gmra.mrb[0].mxu0 %v662
  %v664 = vpop.f32.mrb[0].mxu0
  %v665 = vadd.f32 0.0, %v664
  %v666 = vpop.f32.mrb[0].mxu0
  %667 = vmatprep.mubr.f32.mxu0 0.0
  %v668 = vand.u32 %v281, 4294901760
  %v669 = vsub.f32 %v281, %v668
  %v670 = vand.u32 %v669, 4294901760
  %v671 = vsub.f32 %v669, %v670
  %v672 = vand.u32 %v671, 4294901760
  %673 = vmatmul.mubr.f32.gmra.mrb[0].mxu0 %v672
  %v674 = vpop.f32.mrb[0].mxu0
  %v675 = vadd.f32 0.0, %v674
  %v676 = vpop.f32.mrb[0].mxu0
  %677 = vmatprep.mubr.f32.mxu0 0.0
  %v678 = vand.u32 %v284, 4294901760
  %v679 = vsub.f32 %v284, %v678
  %v680 = vand.u32 %v679, 4294901760
  %v681 = vsub.f32 %v679, %v680
  %v682 = vand.u32 %v681, 4294901760
  %683 = vmatmul.mubr.f32.gmra.mrb[0].mxu0 %v682
  %v684 = vpop.f32.mrb[0].mxu0
  %v685 = vadd.f32 0.0, %v684
  %v686 = vpop.f32.mrb[0].mxu0
  %687 = vdwg.mxu0
  %688 = vmatprep.subr.mxu0 0.0
  %v689 = vand.u32 %v112, 4294901760
  %v690 = vsub.f32 %v112, %v689
  %v691 = vand.u32 %v690, 4294901760
  %v692 = vsub.f32 %v690, %v691
  %v693 = vand.u32 %v692, 4294901760
  %694 = vmatpush1.msra.mxu0 %v693
  %695 = vmatprep.subr.mxu0 0.0
  %v696 = vand.u32 %v113, 4294901760
  %v697 = vsub.f32 %v113, %v696
  %v698 = vand.u32 %v697, 4294901760
  %v699 = vsub.f32 %v697, %v698
  %v700 = vand.u32 %v699, 4294901760
  %701 = vmatpush1.msra.mxu0 %v700
  %702 = vmatprep.subr.mxu0 0.0
  %v703 = vand.u32 %v114, 4294901760
  %v704 = vsub.f32 %v114, %v703
  %v705 = vand.u32 %v704, 4294901760
  %v706 = vsub.f32 %v704, %v705
  %v707 = vand.u32 %v706, 4294901760
  %708 = vmatpush1.msra.mxu0 %v707
  %709 = vmatprep.subr.mxu0 0.0
  %v710 = vand.u32 %v115, 4294901760
  %v711 = vsub.f32 %v115, %v710
  %v712 = vand.u32 %v711, 4294901760
  %v713 = vsub.f32 %v711, %v712
  %v714 = vand.u32 %v713, 4294901760
  %715 = vmatpush1.msra.mxu0 %v714
  %716 = vmatprep.subr.mxu0 0.0
  %v717 = vand.u32 %v116, 4294901760
  %v718 = vsub.f32 %v116, %v717
  %v719 = vand.u32 %v718, 4294901760
  %v720 = vsub.f32 %v718, %v719
  %v721 = vand.u32 %v720, 4294901760
  %722 = vmatpush1.msra.mxu0 %v721
  %723 = vmatprep.subr.mxu0 0.0
  %v724 = vand.u32 %v117, 4294901760
  %v725 = vsub.f32 %v117, %v724
  %v726 = vand.u32 %v725, 4294901760
  %v727 = vsub.f32 %v725, %v726
  %v728 = vand.u32 %v727, 4294901760
  %729 = vmatpush1.msra.mxu0 %v728
  %730 = vmatprep.subr.mxu0 0.0
  %v731 = vand.u32 %v118, 4294901760
  %v732 = vsub.f32 %v118, %v731
  %v733 = vand.u32 %v732, 4294901760
  %v734 = vsub.f32 %v732, %v733
  %v735 = vand.u32 %v734, 4294901760
  %736 = vmatpush1.msra.mxu0 %v735
  %737 = vmatprep.subr.mxu0 0.0
  %v738 = vand.u32 %v119, 4294901760
  %v739 = vsub.f32 %v119, %v738
  %v740 = vand.u32 %v739, 4294901760
  %v741 = vsub.f32 %v739, %v740
  %v742 = vand.u32 %v741, 4294901760
  %743 = vmatpush1.msra.mxu0 %v742
  %744 = vmatprep.subr.mxu0 0.0
  %v745 = vand.u32 %v120, 4294901760
  %v746 = vsub.f32 %v120, %v745
  %v747 = vand.u32 %v746, 4294901760
  %v748 = vsub.f32 %v746, %v747
  %v749 = vand.u32 %v748, 4294901760
  %750 = vmatpush1.msra.mxu0 %v749
  %751 = vmatprep.subr.mxu0 0.0
  %v752 = vand.u32 %v121, 4294901760
  %v753 = vsub.f32 %v121, %v752
  %v754 = vand.u32 %v753, 4294901760
  %v755 = vsub.f32 %v753, %v754
  %v756 = vand.u32 %v755, 4294901760
  %757 = vmatpush1.msra.mxu0 %v756
  %758 = vmatprep.subr.mxu0 0.0
  %v759 = vand.u32 %v122, 4294901760
  %v760 = vsub.f32 %v122, %v759
  %v761 = vand.u32 %v760, 4294901760
  %v762 = vsub.f32 %v760, %v761
  %v763 = vand.u32 %v762, 4294901760
  %764 = vmatpush1.msra.mxu0 %v763
  %765 = vmatprep.subr.mxu0 0.0
  %v766 = vand.u32 %v123, 4294901760
  %v767 = vsub.f32 %v123, %v766
  %v768 = vand.u32 %v767, 4294901760
  %v769 = vsub.f32 %v767, %v768
  %v770 = vand.u32 %v769, 4294901760
  %771 = vmatpush1.msra.mxu0 %v770
  %772 = vmatprep.subr.mxu0 0.0
  %v773 = vand.u32 %v288, 4294901760
  %v774 = vsub.f32 %v288, %v773
  %v775 = vand.u32 %v774, 4294901760
  %v776 = vsub.f32 %v774, %v775
  %v777 = vand.u32 %v776, 4294901760
  %778 = vmatpush1.msra.mxu0 %v777
  %779 = vmatprep.subr.mxu0 0.0
  %780 = vmatpush1.msra.mxu0 0.0
  %781 = vmatprep.subr.mxu0 0.0
  %782 = vmatpush1.msra.mxu0 0.0
  %783 = vmatprep.subr.mxu0 0.0
  %784 = vmatpush1.msra.mxu0 0.0
  %785 = vmatprep.subr.mxu0 0.0
  %786 = vmatpush1.msra.mxu0 0.0
  %787 = vmatprep.subr.mxu0 0.0
  %788 = vmatpush1.msra.mxu0 0.0
  %789 = vmatprep.subr.mxu0 0.0
  %790 = vmatpush1.msra.mxu0 0.0
  %791 = vmatprep.subr.mxu0 0.0
  %792 = vmatpush1.msra.mxu0 0.0
  %793 = vmatprep.subr.mxu0 0.0
  %794 = vmatpush1.msra.mxu0 0.0
  %795 = vmatprep.subr.mxu0 0.0
  %796 = vmatpush1.msra.mxu0 0.0
  %797 = vmatprep.subr.mxu0 0.0
  %798 = vmatpush1.msra.mxu0 0.0
  %799 = vmatprep.subr.mxu0 0.0
  %800 = vmatpush1.msra.mxu0 0.0
  %801 = vmatprep.subr.mxu0 0.0
  %802 = vmatpush1.msra.mxu0 0.0
  %803 = vmatprep.subr.mxu0 0.0
  %804 = vmatpush1.msra.mxu0 0.0
  %805 = vmatprep.subr.mxu0 0.0
  %806 = vmatpush1.msra.mxu0 0.0
  %807 = vmatprep.subr.mxu0 0.0
  %808 = vmatpush1.msra.mxu0 0.0
  %809 = vmatprep.subr.mxu0 0.0
  %810 = vmatpush1.msra.mxu0 0.0
  %811 = vmatprep.subr.mxu0 0.0
  %812 = vmatpush1.msra.mxu0 0.0
  %813 = vmatprep.subr.mxu0 0.0
  %814 = vmatpush1.msra.mxu0 0.0
  %815 = vmatprep.subr.mxu0 0.0
  %816 = vmatpush1.msra.mxu0 0.0
  %817 = vmatprep.mubr.f32.mxu0 0.0
  %v818 = vand.u32 %v191, 4294901760
  %819 = vmatmul.mubr.f32.gmra.mrb[0].mxu0 %v818
  %v820 = vpop.f32.mrb[0].mxu0
  %v821 = vadd.f32 %v375, %v820
  %v822 = vpop.f32.mrb[0].mxu0
  %823 = vmatprep.mubr.f32.mxu0 0.0
  %v824 = vand.u32 %v194, 4294901760
  %825 = vmatmul.mubr.f32.gmra.mrb[0].mxu0 %v824
  %v826 = vpop.f32.mrb[0].mxu0
  %v827 = vadd.f32 %v385, %v826
  %v828 = vpop.f32.mrb[0].mxu0
  %829 = vmatprep.mubr.f32.mxu0 0.0
  %v830 = vand.u32 %v197, 4294901760
  %831 = vmatmul.mubr.f32.gmra.mrb[0].mxu0 %v830
  %v832 = vpop.f32.mrb[0].mxu0
  %v833 = vadd.f32 %v395, %v832
  %v834 = vpop.f32.mrb[0].mxu0
  %835 = vmatprep.mubr.f32.mxu0 0.0
  %v836 = vand.u32 %v200, 4294901760
  %837 = vmatmul.mubr.f32.gmra.mrb[0].mxu0 %v836
  %v838 = vpop.f32.mrb[0].mxu0
  %v839 = vadd.f32 %v405, %v838
  %v840 = vpop.f32.mrb[0].mxu0
  %841 = vmatprep.mubr.f32.mxu0 0.0
  %v842 = vand.u32 %v203, 4294901760
  %843 = vmatmul.mubr.f32.gmra.mrb[0].mxu0 %v842
  %v844 = vpop.f32.mrb[0].mxu0
  %v845 = vadd.f32 %v415, %v844
  %v846 = vpop.f32.mrb[0].mxu0
  %847 = vmatprep.mubr.f32.mxu0 0.0
  %v848 = vand.u32 %v206, 4294901760
  %849 = vmatmul.mubr.f32.gmra.mrb[0].mxu0 %v848
  %v850 = vpop.f32.mrb[0].mxu0
  %v851 = vadd.f32 %v425, %v850
  %v852 = vpop.f32.mrb[0].mxu0
  %853 = vmatprep.mubr.f32.mxu0 0.0
  %v854 = vand.u32 %v209, 4294901760
  %855 = vmatmul.mubr.f32.gmra.mrb[0].mxu0 %v854
  %v856 = vpop.f32.mrb[0].mxu0
  %v857 = vadd.f32 %v435, %v856
  %v858 = vpop.f32.mrb[0].mxu0
  %859 = vmatprep.mubr.f32.mxu0 0.0
  %v860 = vand.u32 %v212, 4294901760
  %861 = vmatmul.mubr.f32.gmra.mrb[0].mxu0 %v860
  %v862 = vpop.f32.mrb[0].mxu0
  %v863 = vadd.f32 %v445, %v862
  %v864 = vpop.f32.mrb[0].mxu0
  %865 = vmatprep.mubr.f32.mxu0 0.0
  %v866 = vand.u32 %v215, 4294901760
  %867 = vmatmul.mubr.f32.gmra.mrb[0].mxu0 %v866
  %v868 = vpop.f32.mrb[0].mxu0
  %v869 = vadd.f32 %v455, %v868
  %v870 = vpop.f32.mrb[0].mxu0
  %871 = vmatprep.mubr.f32.mxu0 0.0
  %v872 = vand.u32 %v218, 4294901760
  %873 = vmatmul.mubr.f32.gmra.mrb[0].mxu0 %v872
  %v874 = vpop.f32.mrb[0].mxu0
  %v875 = vadd.f32 %v465, %v874
  %v876 = vpop.f32.mrb[0].mxu0
  %877 = vmatprep.mubr.f32.mxu0 0.0
  %v878 = vand.u32 %v221, 4294901760
  %879 = vmatmul.mubr.f32.gmra.mrb[0].mxu0 %v878
  %v880 = vpop.f32.mrb[0].mxu0
  %v881 = vadd.f32 %v475, %v880
  %v882 = vpop.f32.mrb[0].mxu0
  %883 = vmatprep.mubr.f32.mxu0 0.0
  %v884 = vand.u32 %v224, 4294901760
  %885 = vmatmul.mubr.f32.gmra.mrb[0].mxu0 %v884
  %v886 = vpop.f32.mrb[0].mxu0
  %v887 = vadd.f32 %v485, %v886
  %v888 = vpop.f32.mrb[0].mxu0
  %889 = vmatprep.mubr.f32.mxu0 0.0
  %v890 = vand.u32 %v227, 4294901760
  %891 = vmatmul.mubr.f32.gmra.mrb[0].mxu0 %v890
  %v892 = vpop.f32.mrb[0].mxu0
  %v893 = vadd.f32 %v495, %v892
  %v894 = vpop.f32.mrb[0].mxu0
  %895 = vmatprep.mubr.f32.mxu0 0.0
  %v896 = vand.u32 %v230, 4294901760
  %897 = vmatmul.mubr.f32.gmra.mrb[0].mxu0 %v896
  %v898 = vpop.f32.mrb[0].mxu0
  %v899 = vadd.f32 %v505, %v898
  %v900 = vpop.f32.mrb[0].mxu0
  %901 = vmatprep.mubr.f32.mxu0 0.0
  %v902 = vand.u32 %v233, 4294901760
  %903 = vmatmul.mubr.f32.gmra.mrb[0].mxu0 %v902
  %v904 = vpop.f32.mrb[0].mxu0
  %v905 = vadd.f32 %v515, %v904
  %v906 = vpop.f32.mrb[0].mxu0
  %907 = vmatprep.mubr.f32.mxu0 0.0
  %v908 = vand.u32 %v236, 4294901760
  %909 = vmatmul.mubr.f32.gmra.mrb[0].mxu0 %v908
  %v910 = vpop.f32.mrb[0].mxu0
  %v911 = vadd.f32 %v525, %v910
  %v912 = vpop.f32.mrb[0].mxu0
  %913 = vmatprep.mubr.f32.mxu0 0.0
  %v914 = vand.u32 %v239, 4294901760
  %915 = vmatmul.mubr.f32.gmra.mrb[0].mxu0 %v914
  %v916 = vpop.f32.mrb[0].mxu0
  %v917 = vadd.f32 %v535, %v916
  %v918 = vpop.f32.mrb[0].mxu0
  %919 = vmatprep.mubr.f32.mxu0 0.0
  %v920 = vand.u32 %v242, 4294901760
  %921 = vmatmul.mubr.f32.gmra.mrb[0].mxu0 %v920
  %v922 = vpop.f32.mrb[0].mxu0
  %v923 = vadd.f32 %v545, %v922
  %v924 = vpop.f32.mrb[0].mxu0
  %925 = vmatprep.mubr.f32.mxu0 0.0
  %v926 = vand.u32 %v245, 4294901760
  %927 = vmatmul.mubr.f32.gmra.mrb[0].mxu0 %v926
  %v928 = vpop.f32.mrb[0].mxu0
  %v929 = vadd.f32 %v555, %v928
  %v930 = vpop.f32.mrb[0].mxu0
  %931 = vmatprep.mubr.f32.mxu0 0.0
  %v932 = vand.u32 %v248, 4294901760
  %933 = vmatmul.mubr.f32.gmra.mrb[0].mxu0 %v932
  %v934 = vpop.f32.mrb[0].mxu0
  %v935 = vadd.f32 %v565, %v934
  %v936 = vpop.f32.mrb[0].mxu0
  %937 = vmatprep.mubr.f32.mxu0 0.0
  %v938 = vand.u32 %v251, 4294901760
  %939 = vmatmul.mubr.f32.gmra.mrb[0].mxu0 %v938
  %v940 = vpop.f32.mrb[0].mxu0
  %v941 = vadd.f32 %v575, %v940
  %v942 = vpop.f32.mrb[0].mxu0
  %943 = vmatprep.mubr.f32.mxu0 0.0
  %v944 = vand.u32 %v254, 4294901760
  %945 = vmatmul.mubr.f32.gmra.mrb[0].mxu0 %v944
  %v946 = vpop.f32.mrb[0].mxu0
  %v947 = vadd.f32 %v585, %v946
  %v948 = vpop.f32.mrb[0].mxu0
  %949 = vmatprep.mubr.f32.mxu0 0.0
  %v950 = vand.u32 %v257, 4294901760
  %951 = vmatmul.mubr.f32.gmra.mrb[0].mxu0 %v950
  %v952 = vpop.f32.mrb[0].mxu0
  %v953 = vadd.f32 %v595, %v952
  %v954 = vpop.f32.mrb[0].mxu0
  %955 = vmatprep.mubr.f32.mxu0 0.0
  %v956 = vand.u32 %v260, 4294901760
  %957 = vmatmul.mubr.f32.gmra.mrb[0].mxu0 %v956
  %v958 = vpop.f32.mrb[0].mxu0
  %v959 = vadd.f32 %v605, %v958
  %v960 = vpop.f32.mrb[0].mxu0
  %961 = vmatprep.mubr.f32.mxu0 0.0
  %v962 = vand.u32 %v263, 4294901760
  %963 = vmatmul.mubr.f32.gmra.mrb[0].mxu0 %v962
  %v964 = vpop.f32.mrb[0].mxu0
  %v965 = vadd.f32 %v615, %v964
  %v966 = vpop.f32.mrb[0].mxu0
  %967 = vmatprep.mubr.f32.mxu0 0.0
  %v968 = vand.u32 %v266, 4294901760
  %969 = vmatmul.mubr.f32.gmra.mrb[0].mxu0 %v968
  %v970 = vpop.f32.mrb[0].mxu0
  %v971 = vadd.f32 %v625, %v970
  %v972 = vpop.f32.mrb[0].mxu0
  %973 = vmatprep.mubr.f32.mxu0 0.0
  %v974 = vand.u32 %v269, 4294901760
  %975 = vmatmul.mubr.f32.gmra.mrb[0].mxu0 %v974
  %v976 = vpop.f32.mrb[0].mxu0
  %v977 = vadd.f32 %v635, %v976
  %v978 = vpop.f32.mrb[0].mxu0
  %979 = vmatprep.mubr.f32.mxu0 0.0
  %v980 = vand.u32 %v272, 4294901760
  %981 = vmatmul.mubr.f32.gmra.mrb[0].mxu0 %v980
  %v982 = vpop.f32.mrb[0].mxu0
  %v983 = vadd.f32 %v645, %v982
  %v984 = vpop.f32.mrb[0].mxu0
  %985 = vmatprep.mubr.f32.mxu0 0.0
  %v986 = vand.u32 %v275, 4294901760
  %987 = vmatmul.mubr.f32.gmra.mrb[0].mxu0 %v986
  %v988 = vpop.f32.mrb[0].mxu0
  %v989 = vadd.f32 %v655, %v988
  %v990 = vpop.f32.mrb[0].mxu0
  %991 = vmatprep.mubr.f32.mxu0 0.0
  %v992 = vand.u32 %v278, 4294901760
  %993 = vmatmul.mubr.f32.gmra.mrb[0].mxu0 %v992
  %v994 = vpop.f32.mrb[0].mxu0
  %v995 = vadd.f32 %v665, %v994
  %v996 = vpop.f32.mrb[0].mxu0
  %997 = vmatprep.mubr.f32.mxu0 0.0
  %v998 = vand.u32 %v281, 4294901760
  %999 = vmatmul.mubr.f32.gmra.mrb[0].mxu0 %v998
  %v1000 = vpop.f32.mrb[0].mxu0
  %v1001 = vadd.f32 %v675, %v1000
  %v1002 = vpop.f32.mrb[0].mxu0
  %1003 = vmatprep.mubr.f32.mxu0 0.0
  %v1004 = vand.u32 %v284, 4294901760
  %1005 = vmatmul.mubr.f32.gmra.mrb[0].mxu0 %v1004
  %v1006 = vpop.f32.mrb[0].mxu0
  %v1007 = vadd.f32 %v685, %v1006
  %v1008 = vpop.f32.mrb[0].mxu0
  %1009 = vdwg.mxu0
  %1010 = vmatprep.subr.mxu0 0.0
  %v1011 = vand.u32 %v112, 4294901760
  %v1012 = vsub.f32 %v112, %v1011
  %1013 = vmatpush1.msra.mxu0 %v1012
  %1014 = vmatprep.subr.mxu0 0.0
  %v1015 = vand.u32 %v113, 4294901760
  %v1016 = vsub.f32 %v113, %v1015
  %1017 = vmatpush1.msra.mxu0 %v1016
  %1018 = vmatprep.subr.mxu0 0.0
  %v1019 = vand.u32 %v114, 4294901760
  %v1020 = vsub.f32 %v114, %v1019
  %1021 = vmatpush1.msra.mxu0 %v1020
  %1022 = vmatprep.subr.mxu0 0.0
  %v1023 = vand.u32 %v115, 4294901760
  %v1024 = vsub.f32 %v115, %v1023
  %1025 = vmatpush1.msra.mxu0 %v1024
  %1026 = vmatprep.subr.mxu0 0.0
  %v1027 = vand.u32 %v116, 4294901760
  %v1028 = vsub.f32 %v116, %v1027
  %1029 = vmatpush1.msra.mxu0 %v1028
  %1030 = vmatprep.subr.mxu0 0.0
  %v1031 = vand.u32 %v117, 4294901760
  %v1032 = vsub.f32 %v117, %v1031
  %1033 = vmatpush1.msra.mxu0 %v1032
  %1034 = vmatprep.subr.mxu0 0.0
  %v1035 = vand.u32 %v118, 4294901760
  %v1036 = vsub.f32 %v118, %v1035
  %1037 = vmatpush1.msra.mxu0 %v1036
  %1038 = vmatprep.subr.mxu0 0.0
  %v1039 = vand.u32 %v119, 4294901760
  %v1040 = vsub.f32 %v119, %v1039
  %1041 = vmatpush1.msra.mxu0 %v1040
  %1042 = vmatprep.subr.mxu0 0.0
  %v1043 = vand.u32 %v120, 4294901760
  %v1044 = vsub.f32 %v120, %v1043
  %1045 = vmatpush1.msra.mxu0 %v1044
  %1046 = vmatprep.subr.mxu0 0.0
  %v1047 = vand.u32 %v121, 4294901760
  %v1048 = vsub.f32 %v121, %v1047
  %1049 = vmatpush1.msra.mxu0 %v1048
  %1050 = vmatprep.subr.mxu0 0.0
  %v1051 = vand.u32 %v122, 4294901760
  %v1052 = vsub.f32 %v122, %v1051
  %1053 = vmatpush1.msra.mxu0 %v1052
  %1054 = vmatprep.subr.mxu0 0.0
  %v1055 = vand.u32 %v123, 4294901760
  %v1056 = vsub.f32 %v123, %v1055
  %1057 = vmatpush1.msra.mxu0 %v1056
  %1058 = vmatprep.subr.mxu0 0.0
  %v1059 = vand.u32 %v288, 4294901760
  %v1060 = vsub.f32 %v288, %v1059
  %1061 = vmatpush1.msra.mxu0 %v1060
  %1062 = vmatprep.subr.mxu0 0.0
  %1063 = vmatpush1.msra.mxu0 0.0
  %1064 = vmatprep.subr.mxu0 0.0
  %1065 = vmatpush1.msra.mxu0 0.0
  %1066 = vmatprep.subr.mxu0 0.0
  %1067 = vmatpush1.msra.mxu0 0.0
  %1068 = vmatprep.subr.mxu0 0.0
  %1069 = vmatpush1.msra.mxu0 0.0
  %1070 = vmatprep.subr.mxu0 0.0
  %1071 = vmatpush1.msra.mxu0 0.0
  %1072 = vmatprep.subr.mxu0 0.0
  %1073 = vmatpush1.msra.mxu0 0.0
  %1074 = vmatprep.subr.mxu0 0.0
  %1075 = vmatpush1.msra.mxu0 0.0
  %1076 = vmatprep.subr.mxu0 0.0
  %1077 = vmatpush1.msra.mxu0 0.0
  %1078 = vmatprep.subr.mxu0 0.0
  %1079 = vmatpush1.msra.mxu0 0.0
  %1080 = vmatprep.subr.mxu0 0.0
  %1081 = vmatpush1.msra.mxu0 0.0
  %1082 = vmatprep.subr.mxu0 0.0
  %1083 = vmatpush1.msra.mxu0 0.0
  %1084 = vmatprep.subr.mxu0 0.0
  %1085 = vmatpush1.msra.mxu0 0.0
  %1086 = vmatprep.subr.mxu0 0.0
  %1087 = vmatpush1.msra.mxu0 0.0
  %1088 = vmatprep.subr.mxu0 0.0
  %1089 = vmatpush1.msra.mxu0 0.0
  %1090 = vmatprep.subr.mxu0 0.0
  %1091 = vmatpush1.msra.mxu0 0.0
  %1092 = vmatprep.subr.mxu0 0.0
  %1093 = vmatpush1.msra.mxu0 0.0
  %1094 = vmatprep.subr.mxu0 0.0
  %1095 = vmatpush1.msra.mxu0 0.0
  %1096 = vmatprep.subr.mxu0 0.0
  %1097 = vmatpush1.msra.mxu0 0.0
  %1098 = vmatprep.subr.mxu0 0.0
  %1099 = vmatpush1.msra.mxu0 0.0
  %1100 = vmatprep.mubr.f32.mxu0 0.0
  %v1101 = vand.u32 %v191, 4294901760
  %v1102 = vsub.f32 %v191, %v1101
  %1103 = vmatmul.mubr.f32.gmra.mrb[0].mxu0 %v1102
  %v1104 = vpop.f32.mrb[0].mxu0
  %v1105 = vadd.f32 %v821, %v1104
  %v1106 = vpop.f32.mrb[0].mxu0
  %1107 = vmatprep.mubr.f32.mxu0 0.0
  %v1108 = vand.u32 %v194, 4294901760
  %v1109 = vsub.f32 %v194, %v1108
  %1110 = vmatmul.mubr.f32.gmra.mrb[0].mxu0 %v1109
  %v1111 = vpop.f32.mrb[0].mxu0
  %v1112 = vadd.f32 %v827, %v1111
  %v1113 = vpop.f32.mrb[0].mxu0
  %1114 = vmatprep.mubr.f32.mxu0 0.0
  %v1115 = vand.u32 %v197, 4294901760
  %v1116 = vsub.f32 %v197, %v1115
  %1117 = vmatmul.mubr.f32.gmra.mrb[0].mxu0 %v1116
  %v1118 = vpop.f32.mrb[0].mxu0
  %v1119 = vadd.f32 %v833, %v1118
  %v1120 = vpop.f32.mrb[0].mxu0
  %1121 = vmatprep.mubr.f32.mxu0 0.0
  %v1122 = vand.u32 %v200, 4294901760
  %v1123 = vsub.f32 %v200, %v1122
  %1124 = vmatmul.mubr.f32.gmra.mrb[0].mxu0 %v1123
  %v1125 = vpop.f32.mrb[0].mxu0
  %v1126 = vadd.f32 %v839, %v1125
  %v1127 = vpop.f32.mrb[0].mxu0
  %1128 = vmatprep.mubr.f32.mxu0 0.0
  %v1129 = vand.u32 %v203, 4294901760
  %v1130 = vsub.f32 %v203, %v1129
  %1131 = vmatmul.mubr.f32.gmra.mrb[0].mxu0 %v1130
  %v1132 = vpop.f32.mrb[0].mxu0
  %v1133 = vadd.f32 %v845, %v1132
  %v1134 = vpop.f32.mrb[0].mxu0
  %1135 = vmatprep.mubr.f32.mxu0 0.0
  %v1136 = vand.u32 %v206, 4294901760
  %v1137 = vsub.f32 %v206, %v1136
  %1138 = vmatmul.mubr.f32.gmra.mrb[0].mxu0 %v1137
  %v1139 = vpop.f32.mrb[0].mxu0
  %v1140 = vadd.f32 %v851, %v1139
  %v1141 = vpop.f32.mrb[0].mxu0
  %1142 = vmatprep.mubr.f32.mxu0 0.0
  %v1143 = vand.u32 %v209, 4294901760
  %v1144 = vsub.f32 %v209, %v1143
  %1145 = vmatmul.mubr.f32.gmra.mrb[0].mxu0 %v1144
  %v1146 = vpop.f32.mrb[0].mxu0
  %v1147 = vadd.f32 %v857, %v1146
  %v1148 = vpop.f32.mrb[0].mxu0
  %1149 = vmatprep.mubr.f32.mxu0 0.0
  %v1150 = vand.u32 %v212, 4294901760
  %v1151 = vsub.f32 %v212, %v1150
  %1152 = vmatmul.mubr.f32.gmra.mrb[0].mxu0 %v1151
  %v1153 = vpop.f32.mrb[0].mxu0
  %v1154 = vadd.f32 %v863, %v1153
  %v1155 = vpop.f32.mrb[0].mxu0
  %1156 = vmatprep.mubr.f32.mxu0 0.0
  %v1157 = vand.u32 %v215, 4294901760
  %v1158 = vsub.f32 %v215, %v1157
  %1159 = vmatmul.mubr.f32.gmra.mrb[0].mxu0 %v1158
  %v1160 = vpop.f32.mrb[0].mxu0
  %v1161 = vadd.f32 %v869, %v1160
  %v1162 = vpop.f32.mrb[0].mxu0
  %1163 = vmatprep.mubr.f32.mxu0 0.0
  %v1164 = vand.u32 %v218, 4294901760
  %v1165 = vsub.f32 %v218, %v1164
  %1166 = vmatmul.mubr.f32.gmra.mrb[0].mxu0 %v1165
  %v1167 = vpop.f32.mrb[0].mxu0
  %v1168 = vadd.f32 %v875, %v1167
  %v1169 = vpop.f32.mrb[0].mxu0
  %1170 = vmatprep.mubr.f32.mxu0 0.0
  %v1171 = vand.u32 %v221, 4294901760
  %v1172 = vsub.f32 %v221, %v1171
  %1173 = vmatmul.mubr.f32.gmra.mrb[0].mxu0 %v1172
  %v1174 = vpop.f32.mrb[0].mxu0
  %v1175 = vadd.f32 %v881, %v1174
  %v1176 = vpop.f32.mrb[0].mxu0
  %1177 = vmatprep.mubr.f32.mxu0 0.0
  %v1178 = vand.u32 %v224, 4294901760
  %v1179 = vsub.f32 %v224, %v1178
  %1180 = vmatmul.mubr.f32.gmra.mrb[0].mxu0 %v1179
  %v1181 = vpop.f32.mrb[0].mxu0
  %v1182 = vadd.f32 %v887, %v1181
  %v1183 = vpop.f32.mrb[0].mxu0
  %1184 = vmatprep.mubr.f32.mxu0 0.0
  %v1185 = vand.u32 %v227, 4294901760
  %v1186 = vsub.f32 %v227, %v1185
  %1187 = vmatmul.mubr.f32.gmra.mrb[0].mxu0 %v1186
  %v1188 = vpop.f32.mrb[0].mxu0
  %v1189 = vadd.f32 %v893, %v1188
  %v1190 = vpop.f32.mrb[0].mxu0
  %1191 = vmatprep.mubr.f32.mxu0 0.0
  %v1192 = vand.u32 %v230, 4294901760
  %v1193 = vsub.f32 %v230, %v1192
  %1194 = vmatmul.mubr.f32.gmra.mrb[0].mxu0 %v1193
  %v1195 = vpop.f32.mrb[0].mxu0
  %v1196 = vadd.f32 %v899, %v1195
  %v1197 = vpop.f32.mrb[0].mxu0
  %1198 = vmatprep.mubr.f32.mxu0 0.0
  %v1199 = vand.u32 %v233, 4294901760
  %v1200 = vsub.f32 %v233, %v1199
  %1201 = vmatmul.mubr.f32.gmra.mrb[0].mxu0 %v1200
  %v1202 = vpop.f32.mrb[0].mxu0
  %v1203 = vadd.f32 %v905, %v1202
  %v1204 = vpop.f32.mrb[0].mxu0
  %1205 = vmatprep.mubr.f32.mxu0 0.0
  %v1206 = vand.u32 %v236, 4294901760
  %v1207 = vsub.f32 %v236, %v1206
  %1208 = vmatmul.mubr.f32.gmra.mrb[0].mxu0 %v1207
  %v1209 = vpop.f32.mrb[0].mxu0
  %v1210 = vadd.f32 %v911, %v1209
  %v1211 = vpop.f32.mrb[0].mxu0
  %1212 = vmatprep.mubr.f32.mxu0 0.0
  %v1213 = vand.u32 %v239, 4294901760
  %v1214 = vsub.f32 %v239, %v1213
  %1215 = vmatmul.mubr.f32.gmra.mrb[0].mxu0 %v1214
  %v1216 = vpop.f32.mrb[0].mxu0
  %v1217 = vadd.f32 %v917, %v1216
  %v1218 = vpop.f32.mrb[0].mxu0
  %1219 = vmatprep.mubr.f32.mxu0 0.0
  %v1220 = vand.u32 %v242, 4294901760
  %v1221 = vsub.f32 %v242, %v1220
  %1222 = vmatmul.mubr.f32.gmra.mrb[0].mxu0 %v1221
  %v1223 = vpop.f32.mrb[0].mxu0
  %v1224 = vadd.f32 %v923, %v1223
  %v1225 = vpop.f32.mrb[0].mxu0
  %1226 = vmatprep.mubr.f32.mxu0 0.0
  %v1227 = vand.u32 %v245, 4294901760
  %v1228 = vsub.f32 %v245, %v1227
  %1229 = vmatmul.mubr.f32.gmra.mrb[0].mxu0 %v1228
  %v1230 = vpop.f32.mrb[0].mxu0
  %v1231 = vadd.f32 %v929, %v1230
  %v1232 = vpop.f32.mrb[0].mxu0
  %1233 = vmatprep.mubr.f32.mxu0 0.0
  %v1234 = vand.u32 %v248, 4294901760
  %v1235 = vsub.f32 %v248, %v1234
  %1236 = vmatmul.mubr.f32.gmra.mrb[0].mxu0 %v1235
  %v1237 = vpop.f32.mrb[0].mxu0
  %v1238 = vadd.f32 %v935, %v1237
  %v1239 = vpop.f32.mrb[0].mxu0
  %1240 = vmatprep.mubr.f32.mxu0 0.0
  %v1241 = vand.u32 %v251, 4294901760
  %v1242 = vsub.f32 %v251, %v1241
  %1243 = vmatmul.mubr.f32.gmra.mrb[0].mxu0 %v1242
  %v1244 = vpop.f32.mrb[0].mxu0
  %v1245 = vadd.f32 %v941, %v1244
  %v1246 = vpop.f32.mrb[0].mxu0
  %1247 = vmatprep.mubr.f32.mxu0 0.0
  %v1248 = vand.u32 %v254, 4294901760
  %v1249 = vsub.f32 %v254, %v1248
  %1250 = vmatmul.mubr.f32.gmra.mrb[0].mxu0 %v1249
  %v1251 = vpop.f32.mrb[0].mxu0
  %v1252 = vadd.f32 %v947, %v1251
  %v1253 = vpop.f32.mrb[0].mxu0
  %1254 = vmatprep.mubr.f32.mxu0 0.0
  %v1255 = vand.u32 %v257, 4294901760
  %v1256 = vsub.f32 %v257, %v1255
  %1257 = vmatmul.mubr.f32.gmra.mrb[0].mxu0 %v1256
  %v1258 = vpop.f32.mrb[0].mxu0
  %v1259 = vadd.f32 %v953, %v1258
  %v1260 = vpop.f32.mrb[0].mxu0
  %1261 = vmatprep.mubr.f32.mxu0 0.0
  %v1262 = vand.u32 %v260, 4294901760
  %v1263 = vsub.f32 %v260, %v1262
  %1264 = vmatmul.mubr.f32.gmra.mrb[0].mxu0 %v1263
  %v1265 = vpop.f32.mrb[0].mxu0
  %v1266 = vadd.f32 %v959, %v1265
  %v1267 = vpop.f32.mrb[0].mxu0
  %1268 = vmatprep.mubr.f32.mxu0 0.0
  %v1269 = vand.u32 %v263, 4294901760
  %v1270 = vsub.f32 %v263, %v1269
  %1271 = vmatmul.mubr.f32.gmra.mrb[0].mxu0 %v1270
  %v1272 = vpop.f32.mrb[0].mxu0
  %v1273 = vadd.f32 %v965, %v1272
  %v1274 = vpop.f32.mrb[0].mxu0
  %1275 = vmatprep.mubr.f32.mxu0 0.0
  %v1276 = vand.u32 %v266, 4294901760
  %v1277 = vsub.f32 %v266, %v1276
  %1278 = vmatmul.mubr.f32.gmra.mrb[0].mxu0 %v1277
  %v1279 = vpop.f32.mrb[0].mxu0
  %v1280 = vadd.f32 %v971, %v1279
  %v1281 = vpop.f32.mrb[0].mxu0
  %1282 = vmatprep.mubr.f32.mxu0 0.0
  %v1283 = vand.u32 %v269, 4294901760
  %v1284 = vsub.f32 %v269, %v1283
  %1285 = vmatmul.mubr.f32.gmra.mrb[0].mxu0 %v1284
  %v1286 = vpop.f32.mrb[0].mxu0
  %v1287 = vadd.f32 %v977, %v1286
  %v1288 = vpop.f32.mrb[0].mxu0
  %1289 = vmatprep.mubr.f32.mxu0 0.0
  %v1290 = vand.u32 %v272, 4294901760
  %v1291 = vsub.f32 %v272, %v1290
  %1292 = vmatmul.mubr.f32.gmra.mrb[0].mxu0 %v1291
  %v1293 = vpop.f32.mrb[0].mxu0
  %v1294 = vadd.f32 %v983, %v1293
  %v1295 = vpop.f32.mrb[0].mxu0
  %1296 = vmatprep.mubr.f32.mxu0 0.0
  %v1297 = vand.u32 %v275, 4294901760
  %v1298 = vsub.f32 %v275, %v1297
  %1299 = vmatmul.mubr.f32.gmra.mrb[0].mxu0 %v1298
  %v1300 = vpop.f32.mrb[0].mxu0
  %v1301 = vadd.f32 %v989, %v1300
  %v1302 = vpop.f32.mrb[0].mxu0
  %1303 = vmatprep.mubr.f32.mxu0 0.0
  %v1304 = vand.u32 %v278, 4294901760
  %v1305 = vsub.f32 %v278, %v1304
  %1306 = vmatmul.mubr.f32.gmra.mrb[0].mxu0 %v1305
  %v1307 = vpop.f32.mrb[0].mxu0
  %v1308 = vadd.f32 %v995, %v1307
  %v1309 = vpop.f32.mrb[0].mxu0
  %1310 = vmatprep.mubr.f32.mxu0 0.0
  %v1311 = vand.u32 %v281, 4294901760
  %v1312 = vsub.f32 %v281, %v1311
  %1313 = vmatmul.mubr.f32.gmra.mrb[0].mxu0 %v1312
  %v1314 = vpop.f32.mrb[0].mxu0
  %v1315 = vadd.f32 %v1001, %v1314
  %v1316 = vpop.f32.mrb[0].mxu0
  %1317 = vmatprep.mubr.f32.mxu0 0.0
  %v1318 = vand.u32 %v284, 4294901760
  %v1319 = vsub.f32 %v284, %v1318
  %1320 = vmatmul.mubr.f32.gmra.mrb[0].mxu0 %v1319
  %v1321 = vpop.f32.mrb[0].mxu0
  %v1322 = vadd.f32 %v1007, %v1321
  %v1323 = vpop.f32.mrb[0].mxu0
  %1324 = vdwg.mxu0
  %1325 = vmatprep.subr.mxu0 0.0
  %v1326 = vand.u32 %v112, 4294901760
  %1327 = vmatpush1.msra.mxu0 %v1326
  %1328 = vmatprep.subr.mxu0 0.0
  %v1329 = vand.u32 %v113, 4294901760
  %1330 = vmatpush1.msra.mxu0 %v1329
  %1331 = vmatprep.subr.mxu0 0.0
  %v1332 = vand.u32 %v114, 4294901760
  %1333 = vmatpush1.msra.mxu0 %v1332
  %1334 = vmatprep.subr.mxu0 0.0
  %v1335 = vand.u32 %v115, 4294901760
  %1336 = vmatpush1.msra.mxu0 %v1335
  %1337 = vmatprep.subr.mxu0 0.0
  %v1338 = vand.u32 %v116, 4294901760
  %1339 = vmatpush1.msra.mxu0 %v1338
  %1340 = vmatprep.subr.mxu0 0.0
  %v1341 = vand.u32 %v117, 4294901760
  %1342 = vmatpush1.msra.mxu0 %v1341
  %1343 = vmatprep.subr.mxu0 0.0
  %v1344 = vand.u32 %v118, 4294901760
  %1345 = vmatpush1.msra.mxu0 %v1344
  %1346 = vmatprep.subr.mxu0 0.0
  %v1347 = vand.u32 %v119, 4294901760
  %1348 = vmatpush1.msra.mxu0 %v1347
  %1349 = vmatprep.subr.mxu0 0.0
  %v1350 = vand.u32 %v120, 4294901760
  %1351 = vmatpush1.msra.mxu0 %v1350
  %1352 = vmatprep.subr.mxu0 0.0
  %v1353 = vand.u32 %v121, 4294901760
  %1354 = vmatpush1.msra.mxu0 %v1353
  %1355 = vmatprep.subr.mxu0 0.0
  %v1356 = vand.u32 %v122, 4294901760
  %1357 = vmatpush1.msra.mxu0 %v1356
  %1358 = vmatprep.subr.mxu0 0.0
  %v1359 = vand.u32 %v123, 4294901760
  %1360 = vmatpush1.msra.mxu0 %v1359
  %1361 = vmatprep.subr.mxu0 0.0
  %v1362 = vand.u32 %v288, 4294901760
  %1363 = vmatpush1.msra.mxu0 %v1362
  %1364 = vmatprep.subr.mxu0 0.0
  %1365 = vmatpush1.msra.mxu0 0.0
  %1366 = vmatprep.subr.mxu0 0.0
  %1367 = vmatpush1.msra.mxu0 0.0
  %1368 = vmatprep.subr.mxu0 0.0
  %1369 = vmatpush1.msra.mxu0 0.0
  %1370 = vmatprep.subr.mxu0 0.0
  %1371 = vmatpush1.msra.mxu0 0.0
  %1372 = vmatprep.subr.mxu0 0.0
  %1373 = vmatpush1.msra.mxu0 0.0
  %1374 = vmatprep.subr.mxu0 0.0
  %1375 = vmatpush1.msra.mxu0 0.0
  %1376 = vmatprep.subr.mxu0 0.0
  %1377 = vmatpush1.msra.mxu0 0.0
  %1378 = vmatprep.subr.mxu0 0.0
  %1379 = vmatpush1.msra.mxu0 0.0
  %1380 = vmatprep.subr.mxu0 0.0
  %1381 = vmatpush1.msra.mxu0 0.0
  %1382 = vmatprep.subr.mxu0 0.0
  %1383 = vmatpush1.msra.mxu0 0.0
  %1384 = vmatprep.subr.mxu0 0.0
  %1385 = vmatpush1.msra.mxu0 0.0
  %1386 = vmatprep.subr.mxu0 0.0
  %1387 = vmatpush1.msra.mxu0 0.0
  %1388 = vmatprep.subr.mxu0 0.0
  %1389 = vmatpush1.msra.mxu0 0.0
  %1390 = vmatprep.subr.mxu0 0.0
  %1391 = vmatpush1.msra.mxu0 0.0
  %1392 = vmatprep.subr.mxu0 0.0
  %1393 = vmatpush1.msra.mxu0 0.0
  %1394 = vmatprep.subr.mxu0 0.0
  %1395 = vmatpush1.msra.mxu0 0.0
  %1396 = vmatprep.subr.mxu0 0.0
  %1397 = vmatpush1.msra.mxu0 0.0
  %1398 = vmatprep.subr.mxu0 0.0
  %1399 = vmatpush1.msra.mxu0 0.0
  %1400 = vmatprep.subr.mxu0 0.0
  %1401 = vmatpush1.msra.mxu0 0.0
  %1402 = vmatprep.mubr.f32.mxu0 0.0
  %v1403 = vand.u32 %v191, 4294901760
  %v1404 = vsub.f32 %v191, %v1403
  %v1405 = vand.u32 %v1404, 4294901760
  %1406 = vmatmul.mubr.f32.gmra.mrb[0].mxu0 %v1405
  %v1407 = vpop.f32.mrb[0].mxu0
  %v1408 = vadd.f32 %v1105, %v1407
  %v1409 = vpop.f32.mrb[0].mxu0
  %1410 = vmatprep.mubr.f32.mxu0 0.0
  %v1411 = vand.u32 %v194, 4294901760
  %v1412 = vsub.f32 %v194, %v1411
  %v1413 = vand.u32 %v1412, 4294901760
  %1414 = vmatmul.mubr.f32.gmra.mrb[0].mxu0 %v1413
  %v1415 = vpop.f32.mrb[0].mxu0
  %v1416 = vadd.f32 %v1112, %v1415
  %v1417 = vpop.f32.mrb[0].mxu0
  %1418 = vmatprep.mubr.f32.mxu0 0.0
  %v1419 = vand.u32 %v197, 4294901760
  %v1420 = vsub.f32 %v197, %v1419
  %v1421 = vand.u32 %v1420, 4294901760
  %1422 = vmatmul.mubr.f32.gmra.mrb[0].mxu0 %v1421
  %v1423 = vpop.f32.mrb[0].mxu0
  %v1424 = vadd.f32 %v1119, %v1423
  %v1425 = vpop.f32.mrb[0].mxu0
  %1426 = vmatprep.mubr.f32.mxu0 0.0
  %v1427 = vand.u32 %v200, 4294901760
  %v1428 = vsub.f32 %v200, %v1427
  %v1429 = vand.u32 %v1428, 4294901760
  %1430 = vmatmul.mubr.f32.gmra.mrb[0].mxu0 %v1429
  %v1431 = vpop.f32.mrb[0].mxu0
  %v1432 = vadd.f32 %v1126, %v1431
  %v1433 = vpop.f32.mrb[0].mxu0
  %1434 = vmatprep.mubr.f32.mxu0 0.0
  %v1435 = vand.u32 %v203, 4294901760
  %v1436 = vsub.f32 %v203, %v1435
  %v1437 = vand.u32 %v1436, 4294901760
  %1438 = vmatmul.mubr.f32.gmra.mrb[0].mxu0 %v1437
  %v1439 = vpop.f32.mrb[0].mxu0
  %v1440 = vadd.f32 %v1133, %v1439
  %v1441 = vpop.f32.mrb[0].mxu0
  %1442 = vmatprep.mubr.f32.mxu0 0.0
  %v1443 = vand.u32 %v206, 4294901760
  %v1444 = vsub.f32 %v206, %v1443
  %v1445 = vand.u32 %v1444, 4294901760
  %1446 = vmatmul.mubr.f32.gmra.mrb[0].mxu0 %v1445
  %v1447 = vpop.f32.mrb[0].mxu0
  %v1448 = vadd.f32 %v1140, %v1447
  %v1449 = vpop.f32.mrb[0].mxu0
  %1450 = vmatprep.mubr.f32.mxu0 0.0
  %v1451 = vand.u32 %v209, 4294901760
  %v1452 = vsub.f32 %v209, %v1451
  %v1453 = vand.u32 %v1452, 4294901760
  %1454 = vmatmul.mubr.f32.gmra.mrb[0].mxu0 %v1453
  %v1455 = vpop.f32.mrb[0].mxu0
  %v1456 = vadd.f32 %v1147, %v1455
  %v1457 = vpop.f32.mrb[0].mxu0
  %1458 = vmatprep.mubr.f32.mxu0 0.0
  %v1459 = vand.u32 %v212, 4294901760
  %v1460 = vsub.f32 %v212, %v1459
  %v1461 = vand.u32 %v1460, 4294901760
  %1462 = vmatmul.mubr.f32.gmra.mrb[0].mxu0 %v1461
  %v1463 = vpop.f32.mrb[0].mxu0
  %v1464 = vadd.f32 %v1154, %v1463
  %v1465 = vpop.f32.mrb[0].mxu0
  %1466 = vmatprep.mubr.f32.mxu0 0.0
  %v1467 = vand.u32 %v215, 4294901760
  %v1468 = vsub.f32 %v215, %v1467
  %v1469 = vand.u32 %v1468, 4294901760
  %1470 = vmatmul.mubr.f32.gmra.mrb[0].mxu0 %v1469
  %v1471 = vpop.f32.mrb[0].mxu0
  %v1472 = vadd.f32 %v1161, %v1471
  %v1473 = vpop.f32.mrb[0].mxu0
  %1474 = vmatprep.mubr.f32.mxu0 0.0
  %v1475 = vand.u32 %v218, 4294901760
  %v1476 = vsub.f32 %v218, %v1475
  %v1477 = vand.u32 %v1476, 4294901760
  %1478 = vmatmul.mubr.f32.gmra.mrb[0].mxu0 %v1477
  %v1479 = vpop.f32.mrb[0].mxu0
  %v1480 = vadd.f32 %v1168, %v1479
  %v1481 = vpop.f32.mrb[0].mxu0
  %1482 = vmatprep.mubr.f32.mxu0 0.0
  %v1483 = vand.u32 %v221, 4294901760
  %v1484 = vsub.f32 %v221, %v1483
  %v1485 = vand.u32 %v1484, 4294901760
  %1486 = vmatmul.mubr.f32.gmra.mrb[0].mxu0 %v1485
  %v1487 = vpop.f32.mrb[0].mxu0
  %v1488 = vadd.f32 %v1175, %v1487
  %v1489 = vpop.f32.mrb[0].mxu0
  %1490 = vmatprep.mubr.f32.mxu0 0.0
  %v1491 = vand.u32 %v224, 4294901760
  %v1492 = vsub.f32 %v224, %v1491
  %v1493 = vand.u32 %v1492, 4294901760
  %1494 = vmatmul.mubr.f32.gmra.mrb[0].mxu0 %v1493
  %v1495 = vpop.f32.mrb[0].mxu0
  %v1496 = vadd.f32 %v1182, %v1495
  %v1497 = vpop.f32.mrb[0].mxu0
  %1498 = vmatprep.mubr.f32.mxu0 0.0
  %v1499 = vand.u32 %v227, 4294901760
  %v1500 = vsub.f32 %v227, %v1499
  %v1501 = vand.u32 %v1500, 4294901760
  %1502 = vmatmul.mubr.f32.gmra.mrb[0].mxu0 %v1501
  %v1503 = vpop.f32.mrb[0].mxu0
  %v1504 = vadd.f32 %v1189, %v1503
  %v1505 = vpop.f32.mrb[0].mxu0
  %1506 = vmatprep.mubr.f32.mxu0 0.0
  %v1507 = vand.u32 %v230, 4294901760
  %v1508 = vsub.f32 %v230, %v1507
  %v1509 = vand.u32 %v1508, 4294901760
  %1510 = vmatmul.mubr.f32.gmra.mrb[0].mxu0 %v1509
  %v1511 = vpop.f32.mrb[0].mxu0
  %v1512 = vadd.f32 %v1196, %v1511
  %v1513 = vpop.f32.mrb[0].mxu0
  %1514 = vmatprep.mubr.f32.mxu0 0.0
  %v1515 = vand.u32 %v233, 4294901760
  %v1516 = vsub.f32 %v233, %v1515
  %v1517 = vand.u32 %v1516, 4294901760
  %1518 = vmatmul.mubr.f32.gmra.mrb[0].mxu0 %v1517
  %v1519 = vpop.f32.mrb[0].mxu0
  %v1520 = vadd.f32 %v1203, %v1519
  %v1521 = vpop.f32.mrb[0].mxu0
  %1522 = vmatprep.mubr.f32.mxu0 0.0
  %v1523 = vand.u32 %v236, 4294901760
  %v1524 = vsub.f32 %v236, %v1523
  %v1525 = vand.u32 %v1524, 4294901760
  %1526 = vmatmul.mubr.f32.gmra.mrb[0].mxu0 %v1525
  %v1527 = vpop.f32.mrb[0].mxu0
  %v1528 = vadd.f32 %v1210, %v1527
  %v1529 = vpop.f32.mrb[0].mxu0
  %1530 = vmatprep.mubr.f32.mxu0 0.0
  %v1531 = vand.u32 %v239, 4294901760
  %v1532 = vsub.f32 %v239, %v1531
  %v1533 = vand.u32 %v1532, 4294901760
  %1534 = vmatmul.mubr.f32.gmra.mrb[0].mxu0 %v1533
  %v1535 = vpop.f32.mrb[0].mxu0
  %v1536 = vadd.f32 %v1217, %v1535
  %v1537 = vpop.f32.mrb[0].mxu0
  %1538 = vmatprep.mubr.f32.mxu0 0.0
  %v1539 = vand.u32 %v242, 4294901760
  %v1540 = vsub.f32 %v242, %v1539
  %v1541 = vand.u32 %v1540, 4294901760
  %1542 = vmatmul.mubr.f32.gmra.mrb[0].mxu0 %v1541
  %v1543 = vpop.f32.mrb[0].mxu0
  %v1544 = vadd.f32 %v1224, %v1543
  %v1545 = vpop.f32.mrb[0].mxu0
  %1546 = vmatprep.mubr.f32.mxu0 0.0
  %v1547 = vand.u32 %v245, 4294901760
  %v1548 = vsub.f32 %v245, %v1547
  %v1549 = vand.u32 %v1548, 4294901760
  %1550 = vmatmul.mubr.f32.gmra.mrb[0].mxu0 %v1549
  %v1551 = vpop.f32.mrb[0].mxu0
  %v1552 = vadd.f32 %v1231, %v1551
  %v1553 = vpop.f32.mrb[0].mxu0
  %1554 = vmatprep.mubr.f32.mxu0 0.0
  %v1555 = vand.u32 %v248, 4294901760
  %v1556 = vsub.f32 %v248, %v1555
  %v1557 = vand.u32 %v1556, 4294901760
  %1558 = vmatmul.mubr.f32.gmra.mrb[0].mxu0 %v1557
  %v1559 = vpop.f32.mrb[0].mxu0
  %v1560 = vadd.f32 %v1238, %v1559
  %v1561 = vpop.f32.mrb[0].mxu0
  %1562 = vmatprep.mubr.f32.mxu0 0.0
  %v1563 = vand.u32 %v251, 4294901760
  %v1564 = vsub.f32 %v251, %v1563
  %v1565 = vand.u32 %v1564, 4294901760
  %1566 = vmatmul.mubr.f32.gmra.mrb[0].mxu0 %v1565
  %v1567 = vpop.f32.mrb[0].mxu0
  %v1568 = vadd.f32 %v1245, %v1567
  %v1569 = vpop.f32.mrb[0].mxu0
  %1570 = vmatprep.mubr.f32.mxu0 0.0
  %v1571 = vand.u32 %v254, 4294901760
  %v1572 = vsub.f32 %v254, %v1571
  %v1573 = vand.u32 %v1572, 4294901760
  %1574 = vmatmul.mubr.f32.gmra.mrb[0].mxu0 %v1573
  %v1575 = vpop.f32.mrb[0].mxu0
  %v1576 = vadd.f32 %v1252, %v1575
  %v1577 = vpop.f32.mrb[0].mxu0
  %1578 = vmatprep.mubr.f32.mxu0 0.0
  %v1579 = vand.u32 %v257, 4294901760
  %v1580 = vsub.f32 %v257, %v1579
  %v1581 = vand.u32 %v1580, 4294901760
  %1582 = vmatmul.mubr.f32.gmra.mrb[0].mxu0 %v1581
  %v1583 = vpop.f32.mrb[0].mxu0
  %v1584 = vadd.f32 %v1259, %v1583
  %v1585 = vpop.f32.mrb[0].mxu0
  %1586 = vmatprep.mubr.f32.mxu0 0.0
  %v1587 = vand.u32 %v260, 4294901760
  %v1588 = vsub.f32 %v260, %v1587
  %v1589 = vand.u32 %v1588, 4294901760
  %1590 = vmatmul.mubr.f32.gmra.mrb[0].mxu0 %v1589
  %v1591 = vpop.f32.mrb[0].mxu0
  %v1592 = vadd.f32 %v1266, %v1591
  %v1593 = vpop.f32.mrb[0].mxu0
  %1594 = vmatprep.mubr.f32.mxu0 0.0
  %v1595 = vand.u32 %v263, 4294901760
  %v1596 = vsub.f32 %v263, %v1595
  %v1597 = vand.u32 %v1596, 4294901760
  %1598 = vmatmul.mubr.f32.gmra.mrb[0].mxu0 %v1597
  %v1599 = vpop.f32.mrb[0].mxu0
  %v1600 = vadd.f32 %v1273, %v1599
  %v1601 = vpop.f32.mrb[0].mxu0
  %1602 = vmatprep.mubr.f32.mxu0 0.0
  %v1603 = vand.u32 %v266, 4294901760
  %v1604 = vsub.f32 %v266, %v1603
  %v1605 = vand.u32 %v1604, 4294901760
  %1606 = vmatmul.mubr.f32.gmra.mrb[0].mxu0 %v1605
  %v1607 = vpop.f32.mrb[0].mxu0
  %v1608 = vadd.f32 %v1280, %v1607
  %v1609 = vpop.f32.mrb[0].mxu0
  %1610 = vmatprep.mubr.f32.mxu0 0.0
  %v1611 = vand.u32 %v269, 4294901760
  %v1612 = vsub.f32 %v269, %v1611
  %v1613 = vand.u32 %v1612, 4294901760
  %1614 = vmatmul.mubr.f32.gmra.mrb[0].mxu0 %v1613
  %v1615 = vpop.f32.mrb[0].mxu0
  %v1616 = vadd.f32 %v1287, %v1615
  %v1617 = vpop.f32.mrb[0].mxu0
  %1618 = vmatprep.mubr.f32.mxu0 0.0
  %v1619 = vand.u32 %v272, 4294901760
  %v1620 = vsub.f32 %v272, %v1619
  %v1621 = vand.u32 %v1620, 4294901760
  %1622 = vmatmul.mubr.f32.gmra.mrb[0].mxu0 %v1621
  %v1623 = vpop.f32.mrb[0].mxu0
  %v1624 = vadd.f32 %v1294, %v1623
  %v1625 = vpop.f32.mrb[0].mxu0
  %1626 = vmatprep.mubr.f32.mxu0 0.0
  %v1627 = vand.u32 %v275, 4294901760
  %v1628 = vsub.f32 %v275, %v1627
  %v1629 = vand.u32 %v1628, 4294901760
  %1630 = vmatmul.mubr.f32.gmra.mrb[0].mxu0 %v1629
  %v1631 = vpop.f32.mrb[0].mxu0
  %v1632 = vadd.f32 %v1301, %v1631
  %v1633 = vpop.f32.mrb[0].mxu0
  %1634 = vmatprep.mubr.f32.mxu0 0.0
  %v1635 = vand.u32 %v278, 4294901760
  %v1636 = vsub.f32 %v278, %v1635
  %v1637 = vand.u32 %v1636, 4294901760
  %1638 = vmatmul.mubr.f32.gmra.mrb[0].mxu0 %v1637
  %v1639 = vpop.f32.mrb[0].mxu0
  %v1640 = vadd.f32 %v1308, %v1639
  %v1641 = vpop.f32.mrb[0].mxu0
  %1642 = vmatprep.mubr.f32.mxu0 0.0
  %v1643 = vand.u32 %v281, 4294901760
  %v1644 = vsub.f32 %v281, %v1643
  %v1645 = vand.u32 %v1644, 4294901760
  %1646 = vmatmul.mubr.f32.gmra.mrb[0].mxu0 %v1645
  %v1647 = vpop.f32.mrb[0].mxu0
  %v1648 = vadd.f32 %v1315, %v1647
  %v1649 = vpop.f32.mrb[0].mxu0
  %1650 = vmatprep.mubr.f32.mxu0 0.0
  %v1651 = vand.u32 %v284, 4294901760
  %v1652 = vsub.f32 %v284, %v1651
  %v1653 = vand.u32 %v1652, 4294901760
  %1654 = vmatmul.mubr.f32.gmra.mrb[0].mxu0 %v1653
  %v1655 = vpop.f32.mrb[0].mxu0
  %v1656 = vadd.f32 %v1322, %v1655
  %v1657 = vpop.f32.mrb[0].mxu0
  %1658 = vdwg.mxu0
  %1659 = vmatprep.subr.mxu0 0.0
  %v1660 = vand.u32 %v112, 4294901760
  %v1661 = vsub.f32 %v112, %v1660
  %v1662 = vand.u32 %v1661, 4294901760
  %1663 = vmatpush1.msra.mxu0 %v1662
  %1664 = vmatprep.subr.mxu0 0.0
  %v1665 = vand.u32 %v113, 4294901760
  %v1666 = vsub.f32 %v113, %v1665
  %v1667 = vand.u32 %v1666, 4294901760
  %1668 = vmatpush1.msra.mxu0 %v1667
  %1669 = vmatprep.subr.mxu0 0.0
  %v1670 = vand.u32 %v114, 4294901760
  %v1671 = vsub.f32 %v114, %v1670
  %v1672 = vand.u32 %v1671, 4294901760
  %1673 = vmatpush1.msra.mxu0 %v1672
  %1674 = vmatprep.subr.mxu0 0.0
  %v1675 = vand.u32 %v115, 4294901760
  %v1676 = vsub.f32 %v115, %v1675
  %v1677 = vand.u32 %v1676, 4294901760
  %1678 = vmatpush1.msra.mxu0 %v1677
  %1679 = vmatprep.subr.mxu0 0.0
  %v1680 = vand.u32 %v116, 4294901760
  %v1681 = vsub.f32 %v116, %v1680
  %v1682 = vand.u32 %v1681, 4294901760
  %1683 = vmatpush1.msra.mxu0 %v1682
  %1684 = vmatprep.subr.mxu0 0.0
  %v1685 = vand.u32 %v117, 4294901760
  %v1686 = vsub.f32 %v117, %v1685
  %v1687 = vand.u32 %v1686, 4294901760
  %1688 = vmatpush1.msra.mxu0 %v1687
  %1689 = vmatprep.subr.mxu0 0.0
  %v1690 = vand.u32 %v118, 4294901760
  %v1691 = vsub.f32 %v118, %v1690
  %v1692 = vand.u32 %v1691, 4294901760
  %1693 = vmatpush1.msra.mxu0 %v1692
  %1694 = vmatprep.subr.mxu0 0.0
  %v1695 = vand.u32 %v119, 4294901760
  %v1696 = vsub.f32 %v119, %v1695
  %v1697 = vand.u32 %v1696, 4294901760
  %1698 = vmatpush1.msra.mxu0 %v1697
  %1699 = vmatprep.subr.mxu0 0.0
  %v1700 = vand.u32 %v120, 4294901760
  %v1701 = vsub.f32 %v120, %v1700
  %v1702 = vand.u32 %v1701, 4294901760
  %1703 = vmatpush1.msra.mxu0 %v1702
  %1704 = vmatprep.subr.mxu0 0.0
  %v1705 = vand.u32 %v121, 4294901760
  %v1706 = vsub.f32 %v121, %v1705
  %v1707 = vand.u32 %v1706, 4294901760
  %1708 = vmatpush1.msra.mxu0 %v1707
  %1709 = vmatprep.subr.mxu0 0.0
  %v1710 = vand.u32 %v122, 4294901760
  %v1711 = vsub.f32 %v122, %v1710
  %v1712 = vand.u32 %v1711, 4294901760
  %1713 = vmatpush1.msra.mxu0 %v1712
  %1714 = vmatprep.subr.mxu0 0.0
  %v1715 = vand.u32 %v123, 4294901760
  %v1716 = vsub.f32 %v123, %v1715
  %v1717 = vand.u32 %v1716, 4294901760
  %1718 = vmatpush1.msra.mxu0 %v1717
  %1719 = vmatprep.subr.mxu0 0.0
  %v1720 = vand.u32 %v288, 4294901760
  %v1721 = vsub.f32 %v288, %v1720
  %v1722 = vand.u32 %v1721, 4294901760
  %1723 = vmatpush1.msra.mxu0 %v1722
  %1724 = vmatprep.subr.mxu0 0.0
  %1725 = vmatpush1.msra.mxu0 0.0
  %1726 = vmatprep.subr.mxu0 0.0
  %1727 = vmatpush1.msra.mxu0 0.0
  %1728 = vmatprep.subr.mxu0 0.0
  %1729 = vmatpush1.msra.mxu0 0.0
  %1730 = vmatprep.subr.mxu0 0.0
  %1731 = vmatpush1.msra.mxu0 0.0
  %1732 = vmatprep.subr.mxu0 0.0
  %1733 = vmatpush1.msra.mxu0 0.0
  %1734 = vmatprep.subr.mxu0 0.0
  %1735 = vmatpush1.msra.mxu0 0.0
  %1736 = vmatprep.subr.mxu0 0.0
  %1737 = vmatpush1.msra.mxu0 0.0
  %1738 = vmatprep.subr.mxu0 0.0
  %1739 = vmatpush1.msra.mxu0 0.0
  %1740 = vmatprep.subr.mxu0 0.0
  %1741 = vmatpush1.msra.mxu0 0.0
  %1742 = vmatprep.subr.mxu0 0.0
  %1743 = vmatpush1.msra.mxu0 0.0
  %1744 = vmatprep.subr.mxu0 0.0
  %1745 = vmatpush1.msra.mxu0 0.0
  %1746 = vmatprep.subr.mxu0 0.0
  %1747 = vmatpush1.msra.mxu0 0.0
  %1748 = vmatprep.subr.mxu0 0.0
  %1749 = vmatpush1.msra.mxu0 0.0
  %1750 = vmatprep.subr.mxu0 0.0
  %1751 = vmatpush1.msra.mxu0 0.0
  %1752 = vmatprep.subr.mxu0 0.0
  %1753 = vmatpush1.msra.mxu0 0.0
  %1754 = vmatprep.subr.mxu0 0.0
  %1755 = vmatpush1.msra.mxu0 0.0
  %1756 = vmatprep.subr.mxu0 0.0
  %1757 = vmatpush1.msra.mxu0 0.0
  %1758 = vmatprep.subr.mxu0 0.0
  %1759 = vmatpush1.msra.mxu0 0.0
  %1760 = vmatprep.subr.mxu0 0.0
  %1761 = vmatpush1.msra.mxu0 0.0
  %1762 = vmatprep.mubr.f32.mxu0 0.0
  %v1763 = vand.u32 %v191, 4294901760
  %1764 = vmatmul.mubr.f32.gmra.mrb[0].mxu0 %v1763
  %v1765 = vpop.f32.mrb[0].mxu0
  %v1766 = vadd.f32 %v1408, %v1765
  %v1767 = vpop.f32.mrb[0].mxu0
  %1768 = vmatprep.mubr.f32.mxu0 0.0
  %v1769 = vand.u32 %v194, 4294901760
  %1770 = vmatmul.mubr.f32.gmra.mrb[0].mxu0 %v1769
  %v1771 = vpop.f32.mrb[0].mxu0
  %v1772 = vadd.f32 %v1416, %v1771
  %v1773 = vpop.f32.mrb[0].mxu0
  %1774 = vmatprep.mubr.f32.mxu0 0.0
  %v1775 = vand.u32 %v197, 4294901760
  %1776 = vmatmul.mubr.f32.gmra.mrb[0].mxu0 %v1775
  %v1777 = vpop.f32.mrb[0].mxu0
  %v1778 = vadd.f32 %v1424, %v1777
  %v1779 = vpop.f32.mrb[0].mxu0
  %1780 = vmatprep.mubr.f32.mxu0 0.0
  %v1781 = vand.u32 %v200, 4294901760
  %1782 = vmatmul.mubr.f32.gmra.mrb[0].mxu0 %v1781
  %v1783 = vpop.f32.mrb[0].mxu0
  %v1784 = vadd.f32 %v1432, %v1783
  %v1785 = vpop.f32.mrb[0].mxu0
  %1786 = vmatprep.mubr.f32.mxu0 0.0
  %v1787 = vand.u32 %v203, 4294901760
  %1788 = vmatmul.mubr.f32.gmra.mrb[0].mxu0 %v1787
  %v1789 = vpop.f32.mrb[0].mxu0
  %v1790 = vadd.f32 %v1440, %v1789
  %v1791 = vpop.f32.mrb[0].mxu0
  %1792 = vmatprep.mubr.f32.mxu0 0.0
  %v1793 = vand.u32 %v206, 4294901760
  %1794 = vmatmul.mubr.f32.gmra.mrb[0].mxu0 %v1793
  %v1795 = vpop.f32.mrb[0].mxu0
  %v1796 = vadd.f32 %v1448, %v1795
  %v1797 = vpop.f32.mrb[0].mxu0
  %1798 = vmatprep.mubr.f32.mxu0 0.0
  %v1799 = vand.u32 %v209, 4294901760
  %1800 = vmatmul.mubr.f32.gmra.mrb[0].mxu0 %v1799
  %v1801 = vpop.f32.mrb[0].mxu0
  %v1802 = vadd.f32 %v1456, %v1801
  %v1803 = vpop.f32.mrb[0].mxu0
  %1804 = vmatprep.mubr.f32.mxu0 0.0
  %v1805 = vand.u32 %v212, 4294901760
  %1806 = vmatmul.mubr.f32.gmra.mrb[0].mxu0 %v1805
  %v1807 = vpop.f32.mrb[0].mxu0
  %v1808 = vadd.f32 %v1464, %v1807
  %v1809 = vpop.f32.mrb[0].mxu0
  %1810 = vmatprep.mubr.f32.mxu0 0.0
  %v1811 = vand.u32 %v215, 4294901760
  %1812 = vmatmul.mubr.f32.gmra.mrb[0].mxu0 %v1811
  %v1813 = vpop.f32.mrb[0].mxu0
  %v1814 = vadd.f32 %v1472, %v1813
  %v1815 = vpop.f32.mrb[0].mxu0
  %1816 = vmatprep.mubr.f32.mxu0 0.0
  %v1817 = vand.u32 %v218, 4294901760
  %1818 = vmatmul.mubr.f32.gmra.mrb[0].mxu0 %v1817
  %v1819 = vpop.f32.mrb[0].mxu0
  %v1820 = vadd.f32 %v1480, %v1819
  %v1821 = vpop.f32.mrb[0].mxu0
  %1822 = vmatprep.mubr.f32.mxu0 0.0
  %v1823 = vand.u32 %v221, 4294901760
  %1824 = vmatmul.mubr.f32.gmra.mrb[0].mxu0 %v1823
  %v1825 = vpop.f32.mrb[0].mxu0
  %v1826 = vadd.f32 %v1488, %v1825
  %v1827 = vpop.f32.mrb[0].mxu0
  %1828 = vmatprep.mubr.f32.mxu0 0.0
  %v1829 = vand.u32 %v224, 4294901760
  %1830 = vmatmul.mubr.f32.gmra.mrb[0].mxu0 %v1829
  %v1831 = vpop.f32.mrb[0].mxu0
  %v1832 = vadd.f32 %v1496, %v1831
  %v1833 = vpop.f32.mrb[0].mxu0
  %1834 = vmatprep.mubr.f32.mxu0 0.0
  %v1835 = vand.u32 %v227, 4294901760
  %1836 = vmatmul.mubr.f32.gmra.mrb[0].mxu0 %v1835
  %v1837 = vpop.f32.mrb[0].mxu0
  %v1838 = vadd.f32 %v1504, %v1837
  %v1839 = vpop.f32.mrb[0].mxu0
  %1840 = vmatprep.mubr.f32.mxu0 0.0
  %v1841 = vand.u32 %v230, 4294901760
  %1842 = vmatmul.mubr.f32.gmra.mrb[0].mxu0 %v1841
  %v1843 = vpop.f32.mrb[0].mxu0
  %v1844 = vadd.f32 %v1512, %v1843
  %v1845 = vpop.f32.mrb[0].mxu0
  %1846 = vmatprep.mubr.f32.mxu0 0.0
  %v1847 = vand.u32 %v233, 4294901760
  %1848 = vmatmul.mubr.f32.gmra.mrb[0].mxu0 %v1847
  %v1849 = vpop.f32.mrb[0].mxu0
  %v1850 = vadd.f32 %v1520, %v1849
  %v1851 = vpop.f32.mrb[0].mxu0
  %1852 = vmatprep.mubr.f32.mxu0 0.0
  %v1853 = vand.u32 %v236, 4294901760
  %1854 = vmatmul.mubr.f32.gmra.mrb[0].mxu0 %v1853
  %v1855 = vpop.f32.mrb[0].mxu0
  %v1856 = vadd.f32 %v1528, %v1855
  %v1857 = vpop.f32.mrb[0].mxu0
  %1858 = vmatprep.mubr.f32.mxu0 0.0
  %v1859 = vand.u32 %v239, 4294901760
  %1860 = vmatmul.mubr.f32.gmra.mrb[0].mxu0 %v1859
  %v1861 = vpop.f32.mrb[0].mxu0
  %v1862 = vadd.f32 %v1536, %v1861
  %v1863 = vpop.f32.mrb[0].mxu0
  %1864 = vmatprep.mubr.f32.mxu0 0.0
  %v1865 = vand.u32 %v242, 4294901760
  %1866 = vmatmul.mubr.f32.gmra.mrb[0].mxu0 %v1865
  %v1867 = vpop.f32.mrb[0].mxu0
  %v1868 = vadd.f32 %v1544, %v1867
  %v1869 = vpop.f32.mrb[0].mxu0
  %1870 = vmatprep.mubr.f32.mxu0 0.0
  %v1871 = vand.u32 %v245, 4294901760
  %1872 = vmatmul.mubr.f32.gmra.mrb[0].mxu0 %v1871
  %v1873 = vpop.f32.mrb[0].mxu0
  %v1874 = vadd.f32 %v1552, %v1873
  %v1875 = vpop.f32.mrb[0].mxu0
  %1876 = vmatprep.mubr.f32.mxu0 0.0
  %v1877 = vand.u32 %v248, 4294901760
  %1878 = vmatmul.mubr.f32.gmra.mrb[0].mxu0 %v1877
  %v1879 = vpop.f32.mrb[0].mxu0
  %v1880 = vadd.f32 %v1560, %v1879
  %v1881 = vpop.f32.mrb[0].mxu0
  %1882 = vmatprep.mubr.f32.mxu0 0.0
  %v1883 = vand.u32 %v251, 4294901760
  %1884 = vmatmul.mubr.f32.gmra.mrb[0].mxu0 %v1883
  %v1885 = vpop.f32.mrb[0].mxu0
  %v1886 = vadd.f32 %v1568, %v1885
  %v1887 = vpop.f32.mrb[0].mxu0
  %1888 = vmatprep.mubr.f32.mxu0 0.0
  %v1889 = vand.u32 %v254, 4294901760
  %1890 = vmatmul.mubr.f32.gmra.mrb[0].mxu0 %v1889
  %v1891 = vpop.f32.mrb[0].mxu0
  %v1892 = vadd.f32 %v1576, %v1891
  %v1893 = vpop.f32.mrb[0].mxu0
  %1894 = vmatprep.mubr.f32.mxu0 0.0
  %v1895 = vand.u32 %v257, 4294901760
  %1896 = vmatmul.mubr.f32.gmra.mrb[0].mxu0 %v1895
  %v1897 = vpop.f32.mrb[0].mxu0
  %v1898 = vadd.f32 %v1584, %v1897
  %v1899 = vpop.f32.mrb[0].mxu0
  %1900 = vmatprep.mubr.f32.mxu0 0.0
  %v1901 = vand.u32 %v260, 4294901760
  %1902 = vmatmul.mubr.f32.gmra.mrb[0].mxu0 %v1901
  %v1903 = vpop.f32.mrb[0].mxu0
  %v1904 = vadd.f32 %v1592, %v1903
  %v1905 = vpop.f32.mrb[0].mxu0
  %1906 = vmatprep.mubr.f32.mxu0 0.0
  %v1907 = vand.u32 %v263, 4294901760
  %1908 = vmatmul.mubr.f32.gmra.mrb[0].mxu0 %v1907
  %v1909 = vpop.f32.mrb[0].mxu0
  %v1910 = vadd.f32 %v1600, %v1909
  %v1911 = vpop.f32.mrb[0].mxu0
  %1912 = vmatprep.mubr.f32.mxu0 0.0
  %v1913 = vand.u32 %v266, 4294901760
  %1914 = vmatmul.mubr.f32.gmra.mrb[0].mxu0 %v1913
  %v1915 = vpop.f32.mrb[0].mxu0
  %v1916 = vadd.f32 %v1608, %v1915
  %v1917 = vpop.f32.mrb[0].mxu0
  %1918 = vmatprep.mubr.f32.mxu0 0.0
  %v1919 = vand.u32 %v269, 4294901760
  %1920 = vmatmul.mubr.f32.gmra.mrb[0].mxu0 %v1919
  %v1921 = vpop.f32.mrb[0].mxu0
  %v1922 = vadd.f32 %v1616, %v1921
  %v1923 = vpop.f32.mrb[0].mxu0
  %1924 = vmatprep.mubr.f32.mxu0 0.0
  %v1925 = vand.u32 %v272, 4294901760
  %1926 = vmatmul.mubr.f32.gmra.mrb[0].mxu0 %v1925
  %v1927 = vpop.f32.mrb[0].mxu0
  %v1928 = vadd.f32 %v1624, %v1927
  %v1929 = vpop.f32.mrb[0].mxu0
  %1930 = vmatprep.mubr.f32.mxu0 0.0
  %v1931 = vand.u32 %v275, 4294901760
  %1932 = vmatmul.mubr.f32.gmra.mrb[0].mxu0 %v1931
  %v1933 = vpop.f32.mrb[0].mxu0
  %v1934 = vadd.f32 %v1632, %v1933
  %v1935 = vpop.f32.mrb[0].mxu0
  %1936 = vmatprep.mubr.f32.mxu0 0.0
  %v1937 = vand.u32 %v278, 4294901760
  %1938 = vmatmul.mubr.f32.gmra.mrb[0].mxu0 %v1937
  %v1939 = vpop.f32.mrb[0].mxu0
  %v1940 = vadd.f32 %v1640, %v1939
  %v1941 = vpop.f32.mrb[0].mxu0
  %1942 = vmatprep.mubr.f32.mxu0 0.0
  %v1943 = vand.u32 %v281, 4294901760
  %1944 = vmatmul.mubr.f32.gmra.mrb[0].mxu0 %v1943
  %v1945 = vpop.f32.mrb[0].mxu0
  %v1946 = vadd.f32 %v1648, %v1945
  %v1947 = vpop.f32.mrb[0].mxu0
  %1948 = vmatprep.mubr.f32.mxu0 0.0
  %v1949 = vand.u32 %v284, 4294901760
  %1950 = vmatmul.mubr.f32.gmra.mrb[0].mxu0 %v1949
  %v1951 = vpop.f32.mrb[0].mxu0
  %v1952 = vadd.f32 %v1656, %v1951
  %v1953 = vpop.f32.mrb[0].mxu0
  %1954 = vdwg.mxu0
  %1955 = vmatprep.subr.mxu0 0.0
  %v1956 = vand.u32 %v112, 4294901760
  %1957 = vmatpush1.msra.mxu0 %v1956
  %1958 = vmatprep.subr.mxu0 0.0
  %v1959 = vand.u32 %v113, 4294901760
  %1960 = vmatpush1.msra.mxu0 %v1959
  %1961 = vmatprep.subr.mxu0 0.0
  %v1962 = vand.u32 %v114, 4294901760
  %1963 = vmatpush1.msra.mxu0 %v1962
  %1964 = vmatprep.subr.mxu0 0.0
  %v1965 = vand.u32 %v115, 4294901760
  %1966 = vmatpush1.msra.mxu0 %v1965
  %1967 = vmatprep.subr.mxu0 0.0
  %v1968 = vand.u32 %v116, 4294901760
  %1969 = vmatpush1.msra.mxu0 %v1968
  %1970 = vmatprep.subr.mxu0 0.0
  %v1971 = vand.u32 %v117, 4294901760
  %1972 = vmatpush1.msra.mxu0 %v1971
  %1973 = vmatprep.subr.mxu0 0.0
  %v1974 = vand.u32 %v118, 4294901760
  %1975 = vmatpush1.msra.mxu0 %v1974
  %1976 = vmatprep.subr.mxu0 0.0
  %v1977 = vand.u32 %v119, 4294901760
  %1978 = vmatpush1.msra.mxu0 %v1977
  %1979 = vmatprep.subr.mxu0 0.0
  %v1980 = vand.u32 %v120, 4294901760
  %1981 = vmatpush1.msra.mxu0 %v1980
  %1982 = vmatprep.subr.mxu0 0.0
  %v1983 = vand.u32 %v121, 4294901760
  %1984 = vmatpush1.msra.mxu0 %v1983
  %1985 = vmatprep.subr.mxu0 0.0
  %v1986 = vand.u32 %v122, 4294901760
  %1987 = vmatpush1.msra.mxu0 %v1986
  %1988 = vmatprep.subr.mxu0 0.0
  %v1989 = vand.u32 %v123, 4294901760
  %1990 = vmatpush1.msra.mxu0 %v1989
  %1991 = vmatprep.subr.mxu0 0.0
  %v1992 = vand.u32 %v288, 4294901760
  %1993 = vmatpush1.msra.mxu0 %v1992
  %1994 = vmatprep.subr.mxu0 0.0
  %1995 = vmatpush1.msra.mxu0 0.0
  %1996 = vmatprep.subr.mxu0 0.0
  %1997 = vmatpush1.msra.mxu0 0.0
  %1998 = vmatprep.subr.mxu0 0.0
  %1999 = vmatpush1.msra.mxu0 0.0
  %2000 = vmatprep.subr.mxu0 0.0
  %2001 = vmatpush1.msra.mxu0 0.0
  %2002 = vmatprep.subr.mxu0 0.0
  %2003 = vmatpush1.msra.mxu0 0.0
  %2004 = vmatprep.subr.mxu0 0.0
  %2005 = vmatpush1.msra.mxu0 0.0
  %2006 = vmatprep.subr.mxu0 0.0
  %2007 = vmatpush1.msra.mxu0 0.0
  %2008 = vmatprep.subr.mxu0 0.0
  %2009 = vmatpush1.msra.mxu0 0.0
  %2010 = vmatprep.subr.mxu0 0.0
  %2011 = vmatpush1.msra.mxu0 0.0
  %2012 = vmatprep.subr.mxu0 0.0
  %2013 = vmatpush1.msra.mxu0 0.0
  %2014 = vmatprep.subr.mxu0 0.0
  %2015 = vmatpush1.msra.mxu0 0.0
  %2016 = vmatprep.subr.mxu0 0.0
  %2017 = vmatpush1.msra.mxu0 0.0
  %2018 = vmatprep.subr.mxu0 0.0
  %2019 = vmatpush1.msra.mxu0 0.0
  %2020 = vmatprep.subr.mxu0 0.0
  %2021 = vmatpush1.msra.mxu0 0.0
  %2022 = vmatprep.subr.mxu0 0.0
  %2023 = vmatpush1.msra.mxu0 0.0
  %2024 = vmatprep.subr.mxu0 0.0
  %2025 = vmatpush1.msra.mxu0 0.0
  %2026 = vmatprep.subr.mxu0 0.0
  %2027 = vmatpush1.msra.mxu0 0.0
  %2028 = vmatprep.subr.mxu0 0.0
  %2029 = vmatpush1.msra.mxu0 0.0
  %2030 = vmatprep.subr.mxu0 0.0
  %2031 = vmatpush1.msra.mxu0 0.0
  %2032 = vmatprep.mubr.f32.mxu0 0.0
  %v2033 = vand.u32 %v191, 4294901760
  %2034 = vmatmul.mubr.f32.gmra.mrb[0].mxu0 %v2033
  %v2035 = vpop.f32.mrb[0].mxu0
  %v2036 = vadd.f32 %v1766, %v2035
  %v2037 = vpop.f32.mrb[0].mxu0
  %2038 = vmatprep.mubr.f32.mxu0 0.0
  %v2039 = vand.u32 %v194, 4294901760
  %2040 = vmatmul.mubr.f32.gmra.mrb[0].mxu0 %v2039
  %v2041 = vpop.f32.mrb[0].mxu0
  %v2042 = vadd.f32 %v1772, %v2041
  %v2043 = vpop.f32.mrb[0].mxu0
  %2044 = vmatprep.mubr.f32.mxu0 0.0
  %v2045 = vand.u32 %v197, 4294901760
  %2046 = vmatmul.mubr.f32.gmra.mrb[0].mxu0 %v2045
  %v2047 = vpop.f32.mrb[0].mxu0
  %v2048 = vadd.f32 %v1778, %v2047
  %v2049 = vpop.f32.mrb[0].mxu0
  %2050 = vmatprep.mubr.f32.mxu0 0.0
  %v2051 = vand.u32 %v200, 4294901760
  %2052 = vmatmul.mubr.f32.gmra.mrb[0].mxu0 %v2051
  %v2053 = vpop.f32.mrb[0].mxu0
  %v2054 = vadd.f32 %v1784, %v2053
  %v2055 = vpop.f32.mrb[0].mxu0
  %2056 = vmatprep.mubr.f32.mxu0 0.0
  %v2057 = vand.u32 %v203, 4294901760
  %2058 = vmatmul.mubr.f32.gmra.mrb[0].mxu0 %v2057
  %v2059 = vpop.f32.mrb[0].mxu0
  %v2060 = vadd.f32 %v1790, %v2059
  %v2061 = vpop.f32.mrb[0].mxu0
  %2062 = vmatprep.mubr.f32.mxu0 0.0
  %v2063 = vand.u32 %v206, 4294901760
  %2064 = vmatmul.mubr.f32.gmra.mrb[0].mxu0 %v2063
  %v2065 = vpop.f32.mrb[0].mxu0
  %v2066 = vadd.f32 %v1796, %v2065
  %v2067 = vpop.f32.mrb[0].mxu0
  %2068 = vmatprep.mubr.f32.mxu0 0.0
  %v2069 = vand.u32 %v209, 4294901760
  %2070 = vmatmul.mubr.f32.gmra.mrb[0].mxu0 %v2069
  %v2071 = vpop.f32.mrb[0].mxu0
  %v2072 = vadd.f32 %v1802, %v2071
  %v2073 = vpop.f32.mrb[0].mxu0
  %2074 = vmatprep.mubr.f32.mxu0 0.0
  %v2075 = vand.u32 %v212, 4294901760
  %2076 = vmatmul.mubr.f32.gmra.mrb[0].mxu0 %v2075
  %v2077 = vpop.f32.mrb[0].mxu0
  %v2078 = vadd.f32 %v1808, %v2077
  %v2079 = vpop.f32.mrb[0].mxu0
  %2080 = vmatprep.mubr.f32.mxu0 0.0
  %v2081 = vand.u32 %v215, 4294901760
  %2082 = vmatmul.mubr.f32.gmra.mrb[0].mxu0 %v2081
  %v2083 = vpop.f32.mrb[0].mxu0
  %v2084 = vadd.f32 %v1814, %v2083
  %v2085 = vpop.f32.mrb[0].mxu0
  %2086 = vmatprep.mubr.f32.mxu0 0.0
  %v2087 = vand.u32 %v218, 4294901760
  %2088 = vmatmul.mubr.f32.gmra.mrb[0].mxu0 %v2087
  %v2089 = vpop.f32.mrb[0].mxu0
  %v2090 = vadd.f32 %v1820, %v2089
  %v2091 = vpop.f32.mrb[0].mxu0
  %2092 = vmatprep.mubr.f32.mxu0 0.0
  %v2093 = vand.u32 %v221, 4294901760
  %2094 = vmatmul.mubr.f32.gmra.mrb[0].mxu0 %v2093
  %v2095 = vpop.f32.mrb[0].mxu0
  %v2096 = vadd.f32 %v1826, %v2095
  %v2097 = vpop.f32.mrb[0].mxu0
  %2098 = vmatprep.mubr.f32.mxu0 0.0
  %v2099 = vand.u32 %v224, 4294901760
  %2100 = vmatmul.mubr.f32.gmra.mrb[0].mxu0 %v2099
  %v2101 = vpop.f32.mrb[0].mxu0
  %v2102 = vadd.f32 %v1832, %v2101
  %v2103 = vpop.f32.mrb[0].mxu0
  %2104 = vmatprep.mubr.f32.mxu0 0.0
  %v2105 = vand.u32 %v227, 4294901760
  %2106 = vmatmul.mubr.f32.gmra.mrb[0].mxu0 %v2105
  %v2107 = vpop.f32.mrb[0].mxu0
  %v2108 = vadd.f32 %v1838, %v2107
  %v2109 = vpop.f32.mrb[0].mxu0
  %2110 = vmatprep.mubr.f32.mxu0 0.0
  %v2111 = vand.u32 %v230, 4294901760
  %2112 = vmatmul.mubr.f32.gmra.mrb[0].mxu0 %v2111
  %v2113 = vpop.f32.mrb[0].mxu0
  %v2114 = vadd.f32 %v1844, %v2113
  %v2115 = vpop.f32.mrb[0].mxu0
  %2116 = vmatprep.mubr.f32.mxu0 0.0
  %v2117 = vand.u32 %v233, 4294901760
  %2118 = vmatmul.mubr.f32.gmra.mrb[0].mxu0 %v2117
  %v2119 = vpop.f32.mrb[0].mxu0
  %v2120 = vadd.f32 %v1850, %v2119
  %v2121 = vpop.f32.mrb[0].mxu0
  %2122 = vmatprep.mubr.f32.mxu0 0.0
  %v2123 = vand.u32 %v236, 4294901760
  %2124 = vmatmul.mubr.f32.gmra.mrb[0].mxu0 %v2123
  %v2125 = vpop.f32.mrb[0].mxu0
  %v2126 = vadd.f32 %v1856, %v2125
  %v2127 = vpop.f32.mrb[0].mxu0
  %2128 = vmatprep.mubr.f32.mxu0 0.0
  %v2129 = vand.u32 %v239, 4294901760
  %2130 = vmatmul.mubr.f32.gmra.mrb[0].mxu0 %v2129
  %v2131 = vpop.f32.mrb[0].mxu0
  %v2132 = vadd.f32 %v1862, %v2131
  %v2133 = vpop.f32.mrb[0].mxu0
  %2134 = vmatprep.mubr.f32.mxu0 0.0
  %v2135 = vand.u32 %v242, 4294901760
  %2136 = vmatmul.mubr.f32.gmra.mrb[0].mxu0 %v2135
  %v2137 = vpop.f32.mrb[0].mxu0
  %v2138 = vadd.f32 %v1868, %v2137
  %v2139 = vpop.f32.mrb[0].mxu0
  %2140 = vmatprep.mubr.f32.mxu0 0.0
  %v2141 = vand.u32 %v245, 4294901760
  %2142 = vmatmul.mubr.f32.gmra.mrb[0].mxu0 %v2141
  %v2143 = vpop.f32.mrb[0].mxu0
  %v2144 = vadd.f32 %v1874, %v2143
  %v2145 = vpop.f32.mrb[0].mxu0
  %2146 = vmatprep.mubr.f32.mxu0 0.0
  %v2147 = vand.u32 %v248, 4294901760
  %2148 = vmatmul.mubr.f32.gmra.mrb[0].mxu0 %v2147
  %v2149 = vpop.f32.mrb[0].mxu0
  %v2150 = vadd.f32 %v1880, %v2149
  %v2151 = vpop.f32.mrb[0].mxu0
  %2152 = vmatprep.mubr.f32.mxu0 0.0
  %v2153 = vand.u32 %v251, 4294901760
  %2154 = vmatmul.mubr.f32.gmra.mrb[0].mxu0 %v2153
  %v2155 = vpop.f32.mrb[0].mxu0
  %v2156 = vadd.f32 %v1886, %v2155
  %v2157 = vpop.f32.mrb[0].mxu0
  %2158 = vmatprep.mubr.f32.mxu0 0.0
  %v2159 = vand.u32 %v254, 4294901760
  %2160 = vmatmul.mubr.f32.gmra.mrb[0].mxu0 %v2159
  %v2161 = vpop.f32.mrb[0].mxu0
  %v2162 = vadd.f32 %v1892, %v2161
  %v2163 = vpop.f32.mrb[0].mxu0
  %2164 = vmatprep.mubr.f32.mxu0 0.0
  %v2165 = vand.u32 %v257, 4294901760
  %2166 = vmatmul.mubr.f32.gmra.mrb[0].mxu0 %v2165
  %v2167 = vpop.f32.mrb[0].mxu0
  %v2168 = vadd.f32 %v1898, %v2167
  %v2169 = vpop.f32.mrb[0].mxu0
  %2170 = vmatprep.mubr.f32.mxu0 0.0
  %v2171 = vand.u32 %v260, 4294901760
  %2172 = vmatmul.mubr.f32.gmra.mrb[0].mxu0 %v2171
  %v2173 = vpop.f32.mrb[0].mxu0
  %v2174 = vadd.f32 %v1904, %v2173
  %v2175 = vpop.f32.mrb[0].mxu0
  %2176 = vmatprep.mubr.f32.mxu0 0.0
  %v2177 = vand.u32 %v263, 4294901760
  %2178 = vmatmul.mubr.f32.gmra.mrb[0].mxu0 %v2177
  %v2179 = vpop.f32.mrb[0].mxu0
  %v2180 = vadd.f32 %v1910, %v2179
  %v2181 = vpop.f32.mrb[0].mxu0
  %2182 = vmatprep.mubr.f32.mxu0 0.0
  %v2183 = vand.u32 %v266, 4294901760
  %2184 = vmatmul.mubr.f32.gmra.mrb[0].mxu0 %v2183
  %v2185 = vpop.f32.mrb[0].mxu0
  %v2186 = vadd.f32 %v1916, %v2185
  %v2187 = vpop.f32.mrb[0].mxu0
  %2188 = vmatprep.mubr.f32.mxu0 0.0
  %v2189 = vand.u32 %v269, 4294901760
  %2190 = vmatmul.mubr.f32.gmra.mrb[0].mxu0 %v2189
  %v2191 = vpop.f32.mrb[0].mxu0
  %v2192 = vadd.f32 %v1922, %v2191
  %v2193 = vpop.f32.mrb[0].mxu0
  %2194 = vmatprep.mubr.f32.mxu0 0.0
  %v2195 = vand.u32 %v272, 4294901760
  %2196 = vmatmul.mubr.f32.gmra.mrb[0].mxu0 %v2195
  %v2197 = vpop.f32.mrb[0].mxu0
  %v2198 = vadd.f32 %v1928, %v2197
  %v2199 = vpop.f32.mrb[0].mxu0
  %2200 = vmatprep.mubr.f32.mxu0 0.0
  %v2201 = vand.u32 %v275, 4294901760
  %2202 = vmatmul.mubr.f32.gmra.mrb[0].mxu0 %v2201
  %v2203 = vpop.f32.mrb[0].mxu0
  %v2204 = vadd.f32 %v1934, %v2203
  %v2205 = vpop.f32.mrb[0].mxu0
  %2206 = vmatprep.mubr.f32.mxu0 0.0
  %v2207 = vand.u32 %v278, 4294901760
  %2208 = vmatmul.mubr.f32.gmra.mrb[0].mxu0 %v2207
  %v2209 = vpop.f32.mrb[0].mxu0
  %v2210 = vadd.f32 %v1940, %v2209
  %v2211 = vpop.f32.mrb[0].mxu0
  %2212 = vmatprep.mubr.f32.mxu0 0.0
  %v2213 = vand.u32 %v281, 4294901760
  %2214 = vmatmul.mubr.f32.gmra.mrb[0].mxu0 %v2213
  %v2215 = vpop.f32.mrb[0].mxu0
  %v2216 = vadd.f32 %v1946, %v2215
  %v2217 = vpop.f32.mrb[0].mxu0
  %2218 = vmatprep.mubr.f32.mxu0 0.0
  %v2219 = vand.u32 %v284, 4294901760
  %2220 = vmatmul.mubr.f32.gmra.mrb[0].mxu0 %v2219
  %v2221 = vpop.f32.mrb[0].mxu0
  %v2222 = vadd.f32 %v1952, %v2221
  %v2223 = vpop.f32.mrb[0].mxu0
  %2224 = vdwg.mxu0
  %v2225 = vmul.f32 %v2036, 5.656854
  %v2226 = vmul.f32 %v2042, 5.656854
  %v2227 = vmul.f32 %v2048, 5.656854
  %v2228 = vmul.f32 %v2054, 5.656854
  %v2229 = vmul.f32 %v2060, 5.656854
  %v2230 = vmul.f32 %v2066, 5.656854
  %v2231 = vmul.f32 %v2072, 5.656854
  %v2232 = vmul.f32 %v2078, 5.656854
  %v2233 = vmul.f32 %v2084, 5.656854
  %v2234 = vmul.f32 %v2090, 5.656854
  %v2235 = vmul.f32 %v2096, 5.656854
  %v2236 = vmul.f32 %v2102, 5.656854
  %v2237 = vmul.f32 %v2108, 5.656854
  %v2238 = vmul.f32 %v2114, 5.656854
  %v2239 = vmul.f32 %v2120, 5.656854
  %v2240 = vmul.f32 %v2126, 5.656854
  %v2241 = vmul.f32 %v2132, 5.656854
  %v2242 = vmul.f32 %v2138, 5.656854
  %v2243 = vmul.f32 %v2144, 5.656854
  %v2244 = vmul.f32 %v2150, 5.656854
  %v2245 = vmul.f32 %v2156, 5.656854
  %v2246 = vmul.f32 %v2162, 5.656854
  %v2247 = vmul.f32 %v2168, 5.656854
  %v2248 = vmul.f32 %v2174, 5.656854
  %v2249 = vmul.f32 %v2180, 5.656854
  %v2250 = vmul.f32 %v2186, 5.656854
  %v2251 = vmul.f32 %v2192, 5.656854
  %v2252 = vmul.f32 %v2198, 5.656854
  %v2253 = vmul.f32 %v2204, 5.656854
  %v2254 = vmul.f32 %v2210, 5.656854
  %v2255 = vmul.f32 %v2216, 5.656854
  %v2256 = vmul.f32 %v2222, 5.656854
  %vm2257 = vcmask 261120
  %2258 = vst.msk [vmem:[%s2] sm:$0xff] %vm2257, %v2225
  %2259 = vst.msk [vmem:[%s2 + $0x8] sm:$0xff] %vm2257, %v2226
  %2260 = vst.msk [vmem:[%s2 + $0x10] sm:$0xff] %vm2257, %v2227
  %2261 = vst.msk [vmem:[%s2 + $0x18] sm:$0xff] %vm2257, %v2228
  %2262 = vst.msk [vmem:[%s2 + $0x20] sm:$0xff] %vm2257, %v2229
  %2263 = vst.msk [vmem:[%s2 + $0x28] sm:$0xff] %vm2257, %v2230
  %2264 = vst.msk [vmem:[%s2 + $0x30] sm:$0xff] %vm2257, %v2231
  %2265 = vst.msk [vmem:[%s2 + $0x38] sm:$0xff] %vm2257, %v2232
  %2266 = vst.msk [vmem:[%s2 + $0x40] sm:$0xff] %vm2257, %v2233
  %2267 = vst.msk [vmem:[%s2 + $0x48] sm:$0xff] %vm2257, %v2234
  %2268 = vst.msk [vmem:[%s2 + $0x50] sm:$0xff] %vm2257, %v2235
  %2269 = vst.msk [vmem:[%s2 + $0x58] sm:$0xff] %vm2257, %v2236
  %2270 = vst.msk [vmem:[%s2 + $0x60] sm:$0xff] %vm2257, %v2237
  %2271 = vst.msk [vmem:[%s2 + $0x68] sm:$0xff] %vm2257, %v2238
  %2272 = vst.msk [vmem:[%s2 + $0x70] sm:$0xff] %vm2257, %v2239
  %2273 = vst.msk [vmem:[%s2 + $0x78] sm:$0xff] %vm2257, %v2240
  %2274 = vst.msk [vmem:[%s2 + $0x80] sm:$0xff] %vm2257, %v2241
  %2275 = vst.msk [vmem:[%s2 + $0x88] sm:$0xff] %vm2257, %v2242
  %2276 = vst.msk [vmem:[%s2 + $0x90] sm:$0xff] %vm2257, %v2243
  %2277 = vst.msk [vmem:[%s2 + $0x98] sm:$0xff] %vm2257, %v2244
  %2278 = vst.msk [vmem:[%s2 + $0xa0] sm:$0xff] %vm2257, %v2245
  %2279 = vst.msk [vmem:[%s2 + $0xa8] sm:$0xff] %vm2257, %v2246
  %2280 = vst.msk [vmem:[%s2 + $0xb0] sm:$0xff] %vm2257, %v2247
  %2281 = vst.msk [vmem:[%s2 + $0xb8] sm:$0xff] %vm2257, %v2248
  %2282 = vst.msk [vmem:[%s2 + $0xc0] sm:$0xff] %vm2257, %v2249
  %2283 = vst.msk [vmem:[%s2 + $0xc8] sm:$0xff] %vm2257, %v2250
  %2284 = vst.msk [vmem:[%s2 + $0xd0] sm:$0xff] %vm2257, %v2251
  %2285 = vst.msk [vmem:[%s2 + $0xd8] sm:$0xff] %vm2257, %v2252
  %2286 = vst.msk [vmem:[%s2 + $0xe0] sm:$0xff] %vm2257, %v2253
  %2287 = vst.msk [vmem:[%s2 + $0xe8] sm:$0xff] %vm2257, %v2254
  %2288 = vst.msk [vmem:[%s2 + $0xf0] sm:$0xff] %vm2257, %v2255
  %2289 = vst.msk [vmem:[%s2 + $0xf8] sm:$0xff] %vm2257, %v2256
  // Predicated region
  $region10: #{tpu_custom_call.1} parent=0 // pred_check
    _
  $region11: #{tpu_custom_call.1} parent=0 // pred_check_branch
    %2291 = sbr.rel (0) target = $region13
  $region12: #{tpu_custom_call.1} parent=0 // pred_region
    _
  $region13: #{tpu_custom_call.1} parent=0 // pred_fallthru
    _
  // Predicated region
  $region14: #{tpu_custom_call.1} parent=0 // pred_check
    _
  $region15: #{tpu_custom_call.1} parent=0 // pred_check_branch
    %2293 = sbr.rel (0) target = $region17
  $region16: #{tpu_custom_call.1} parent=0 // pred_region
    _
  $region17: #{tpu_custom_call.1} parent=0 // pred_fallthru
    _

</llo_original>
